<compile_context>
chip_gen: v5e
topology: v5e:2x2
jax: 0.10.0
libtpu: 0.0.40
codegen_flags: <defaults>
</compile_context>

<pallas_src>
import math
import functools

import jax
import jax.numpy as jnp
from jax import lax
from jax.experimental import pallas as pl
from jax.experimental.pallas import tpu as pltpu


# --------------------------------------------------------------------------
# Pallas kernel: one TransformerXLEncoderLayer (relative attention + FFN),
# one batch item per grid step.
# --------------------------------------------------------------------------
def xl_layer_kernel(x_ref, mem_ref, r_ref, u_ref, v_ref,
                    wq_ref, bq_ref, wkv_ref, bkv_ref,
                    wo_ref, bo_ref, w1_ref, b1_ref, w2_ref, b2_ref,
                    ln_g_ref, ln_b_ref,
                    out_ref, ctx_ref, *, num_heads, depth):
    f32 = jnp.float32
    bf16 = jnp.bfloat16

    x = x_ref[0]                        # (Q, D) f32 : query-side input
    mem = mem_ref[0]                    # (M, D) f32 : recurrent memory
    Q, D = x.shape
    M = mem.shape[0]
    K = M + Q
    H = num_heads

    def layer_norm(z, g, b):            # f32 stats, eps = 1e-5 (torch default)
        mu = jnp.mean(z, axis=-1, keepdims=True)
        var = jnp.mean(jnp.square(z - mu), axis=-1, keepdims=True)
        return (z - mu) * lax.rsqrt(var + 1e-5) * g + b

    def to_heads(t, dtype):
        # (S, D) -> (H, S, depth): static lane slices stacked on a new leading
        # dim (leading-dim concat, no sublane relayout).
        return jnp.stack(
            [t[:, h * depth:(h + 1) * depth] for h in range(H)],
            axis=0).astype(dtype)

    x16 = x.astype(bf16)
    mem16 = mem.astype(bf16)

    # ---- projections: bf16 operands on the MXU, f32 accumulation -----------
    # Wq / bq / u / v are pre-scaled by 1/sqrt(depth) at trace time.
    q = jnp.dot(x16, wq_ref[...], preferred_element_type=f32) + bq_ref[...]
    q_heads = to_heads(q, f32)                                   # (H, Q, depth)
    q_u16 = (q_heads + u_ref[...]).astype(bf16)                  # content query
    q_v16 = (q_heads + v_ref[...]).astype(bf16)                  # position query

    # fused K|V projection, run on the memory and current slabs separately so
    # concat(mem, x) never exists in HBM (and x is only DMA'd once).
    kvp_m = jnp.dot(mem16, wkv_ref[...], preferred_element_type=f32) + bkv_ref[...]
    kvp_x = jnp.dot(x16, wkv_ref[...], preferred_element_type=f32) + bkv_ref[...]
    k_m16 = to_heads(kvp_m[:, :D], bf16)        # (H, M, depth)
    v_m16 = to_heads(kvp_m[:, D:], bf16)
    k_x16 = to_heads(kvp_x[:, :D], bf16)        # (H, Q, depth)
    v_x16 = to_heads(kvp_x[:, D:], bf16)

    # ---- batched per-head scores (single einsum per tensor) ----------------
    content = jnp.concatenate(
        [jnp.einsum('hqd,hkd->hqk', q_u16, k_m16, preferred_element_type=f32),
         jnp.einsum('hqd,hkd->hqk', q_u16, k_x16, preferred_element_type=f32)],
        axis=2)                                                   # (H, Q, K)
    posatt = jnp.einsum('hqd,hkd->hqk', q_v16, r_ref[...],
                        preferred_element_type=f32)               # (H, Q, K)

    # ---- relative shift ("skew"), log2(Q) rotation decomposition -----------
    # Row l of every head must be rotated left by a_l = Q-1-l lanes (mod K).
    # We compose rolls of power-of-two shifts, selecting rows by the bits of
    # a_l.  Lanes that wrap land at m >= M + l + 1, strictly inside the masked
    # region (mask allows m <= M + l), and masking is applied with jnp.where
    # afterwards, so wrapped values never reach the softmax.
    row = lax.broadcasted_iota(jnp.int32, (H, Q, K), 1)
    col = lax.broadcasted_iota(jnp.int32, (H, Q, K), 2)
    amount = (Q - 1) - row
    pos_skew = posatt
    s = 1
    while s < Q:                                  # static, ceil(log2(Q)) steps
        rolled = jnp.roll(pos_skew, -s, axis=2)
        pos_skew = jnp.where((amount & s) != 0, rolled, pos_skew)
        s *= 2

    # ---- masked softmax in f32 (mask via where, reciprocal on the EUP) -----
    allowed = col <= row + M                      # causal mask incl. memory
    logits = jnp.where(allowed, content + pos_skew, f32(-1e9))
    mx = jnp.max(logits, axis=-1, keepdims=True)
    e = jnp.exp(logits - mx)
    wts = e * pl.reciprocal(jnp.sum(e, axis=-1, keepdims=True), approx=True)
    w16 = wts.astype(bf16)

    # ---- attention @ V (batched) and single full-width output projection ---
    ctx = (jnp.einsum('hqk,hkd->hqd', w16[:, :, :M], v_m16,
                      preferred_element_type=f32)
           + jnp.einsum('hqk,hkd->hqd', w16[:, :, M:], v_x16,
                        preferred_element_type=f32))              # (H, Q, depth)
    for h in range(H):                            # merge heads into (Q, D)
        ctx_ref[:, h * depth:(h + 1) * depth] = ctx[h]
    attn = jnp.dot(ctx_ref[...].astype(bf16), wo_ref[...],
                   preferred_element_type=f32) + bo_ref[...]

    # ---- residual + LN + FFN + residual + LN (post-norm) -------------------
    # TODO(synk): dropout layers are identity here (eval mode) — no RNG masks.
    y = layer_norm(x + attn, ln_g_ref[0], ln_b_ref[0])
    h1 = jnp.maximum(jnp.dot(y.astype(bf16), w1_ref[...],
                             preferred_element_type=f32) + b1_ref[...], 0.0)
    ff = jnp.dot(h1.astype(bf16), w2_ref[...],
                 preferred_element_type=f32) + b2_ref[...]
    out_ref[0] = layer_norm(y + ff, ln_g_ref[1], ln_b_ref[1])


# --------------------------------------------------------------------------
# Wrapper for one encoder layer: BlockSpecs + pallas_call
# --------------------------------------------------------------------------
def _invariant_spec(shape):
    n = len(shape)
    return pl.BlockSpec(shape, lambda b, _n=n: (0,) * _n)


def _vmem_limit_bytes(Q, M, D, F, H, depth):
    K = M + Q
    f32b, bf16b = 4, 2
    block_bytes = (
        Q * D * f32b + M * D * f32b + Q * D * f32b            # x, mem, out
        + H * K * depth * bf16b + 2 * H * depth * f32b        # r, u, v
        + D * D * bf16b + D * f32b                            # wq, bq
        + D * 2 * D * bf16b + 2 * D * f32b                    # wkv, bkv
        + D * D * bf16b + D * f32b                            # wo, bo
        + D * F * bf16b + F * f32b                            # w1, b1
        + F * D * bf16b + D * f32b                            # w2, b2
        + 4 * D * f32b)                                        # layernorms
    temps = (8 * H * Q * K * f32b                 # score / softmax / skew
             + 4 * H * K * depth * bf16b          # head-major k/v slabs
             + 2 * Q * max(F, 2 * D) * f32b)      # FFN / kv projections
    need = 2 * block_bytes + Q * D * f32b + temps
    return int(min(max(need, 32 * 1024 * 1024), 64 * 1024 * 1024))


def xl_layer_forward(x, mem, r_heads, u_s, v_s, lp, *, nhead):
    B, Q, D = x.shape
    M = mem.shape[1]
    K = M + Q
    depth = D // nhead
    F = lp["w1"].shape[1]
    # TODO(synk): the mlen == 0 (init_mem) path needs a kernel variant without
    # the memory operand; the demo always runs with a non-empty memory.
    assert M >= 1, "Pallas TransformerXL layer expects non-empty memory"

    scale = 1.0 / math.sqrt(depth)
    # fold the attention scale into the query projection at trace time
    wq_s = (lp["wq"].astype(jnp.float32) * scale).astype(jnp.bfloat16)
    bq_s = lp["bq"] * scale

    kernel = functools.partial(xl_layer_kernel, num_heads=nhead, depth=depth)

    grid_spec = pltpu.PrefetchScalarGridSpec(
        num_scalar_prefetch=0,
        grid=(B,),
        in_specs=[
            pl.BlockSpec((1, Q, D), lambda b: (b, 0, 0)),   # x
            pl.BlockSpec((1, M, D), lambda b: (b, 0, 0)),   # memory
            _invariant_spec((nhead, K, depth)),   # positional proj (head-major)
            _invariant_spec((nhead, 1, depth)),   # u (pre-scaled)
            _invariant_spec((nhead, 1, depth)),   # v (pre-scaled)
            _invariant_spec((D, D)),              # Wq (bf16, pre-scaled)
            _invariant_spec((1, D)),              # bq (pre-scaled)
            _invariant_spec((D, 2 * D)),          # Wk|Wv packed (bf16)
            _invariant_spec((1, 2 * D)),          # bk|bv packed
            _invariant_spec((D, D)),              # Wo (bf16)
            _invariant_spec((1, D)),              # bo
            _invariant_spec((D, F)),              # W1 (bf16)
            _invariant_spec((1, F)),              # b1
            _invariant_spec((F, D)),              # W2 (bf16)
            _invariant_spec((1, D)),              # b2
            _invariant_spec((2, 1, D)),           # layernorm gammas
            _invariant_spec((2, 1, D)),           # layernorm betas
        ],
        out_specs=pl.BlockSpec((1, Q, D), lambda b: (b, 0, 0)),
        scratch_shapes=[pltpu.VMEM((Q, D), jnp.float32)],   # merged attn ctx
    )
    return pl.pallas_call(
        kernel,
        out_shape=jax.ShapeDtypeStruct((B, Q, D), jnp.float32),
        grid_spec=grid_spec,
        compiler_params=pltpu.CompilerParams(
            dimension_semantics=("parallel",),
            vmem_limit_bytes=_vmem_limit_bytes(Q, M, D, F, nhead, depth)),
    )(x, mem, r_heads, u_s, v_s,
      wq_s, bq_s, lp["wkv"], lp["bkv"], lp["wo"], lp["bo"],
      lp["w1"], lp["b1"], lp["w2"], lp["b2"],
      lp["ln_g"], lp["ln_b"])


# --------------------------------------------------------------------------
# Full TransformerXL forward (eval mode): per-layer kernel calls + glue that
# mirrors PositionalEncoding('add'), create_mask and _update_mems.
# --------------------------------------------------------------------------
def sinusoid_positional_encoding(length, d_model):
    position = jnp.arange(length, dtype=jnp.float32)[:, None]
    div_term = jnp.exp(jnp.arange(0, d_model, 2, dtype=jnp.float32)
                       * (-math.log(10000.0) / d_model))
    ang = position * div_term
    return jnp.stack([jnp.sin(ang), jnp.cos(ang)], axis=-1).reshape(length, d_model)


def transformer_xl_forward(tgt, memory, params):
    """Returns (output, new_mems), like TransformerXL.forward."""
    B, Q, D = tgt.shape
    nhead = params["nhead"]
    depth = D // nhead
    mlen = memory[0].shape[1]
    K = mlen + Q
    scale = 1.0 / math.sqrt(depth)

    # pos_enb('add') on zeros -> raw sin/cos table, then / sqrt(d_model)
    pos = sinusoid_positional_encoding(K, D) / math.sqrt(D)
    # global content / position biases, pre-scaled and head-major
    u_s = (params["u"] * scale).reshape(nhead, 1, depth).astype(jnp.float32)
    v_s = (params["v"] * scale).reshape(nhead, 1, depth).astype(jnp.float32)

    out = tgt
    layer_inputs = []
    for mem, lp in zip(memory, params["layers"]):
        layer_inputs.append(out)                  # new_mems collect layer inputs
        # batch-invariant positional projection hoisted out of the kernel
        r = pos @ lp["wp"].astype(jnp.float32) + lp["bp"]          # (K, D)
        r_heads = r.reshape(K, nhead, depth).transpose(1, 0, 2).astype(jnp.bfloat16)
        out = xl_layer_forward(out, mem, r_heads, u_s, v_s, lp, nhead=nhead)

    end = mlen + Q
    start = max(0, end - params["max_mem_length"])
    new_mems = [jnp.concatenate([m, o], axis=1)[:, start:end]
                for m, o in zip(memory, layer_inputs)]
    return out, new_mems


# --------------------------------------------------------------------------
# Pure-JAX reference mirroring the PyTorch module (f32 math, torch-style skew)
# --------------------------------------------------------------------------
def reference_transformer_xl(tgt, memory, params):
    B, Q, D = tgt.shape
    H = params["nhead"]
    depth = D // H
    mlen = memory[0].shape[1]
    f32 = jnp.float32
    pos = sinusoid_positional_encoding(mlen + Q, D) / math.sqrt(D)
    mask = jnp.triu(jnp.ones((Q, Q + mlen)), k=mlen + 1) == 0   # True = allowed

    def ln(z, g, b):
        mu = z.mean(-1, keepdims=True)
        var = ((z - mu) ** 2).mean(-1, keepdims=True)
        return (z - mu) / jnp.sqrt(var + 1e-5) * g + b

    def skew(rel):   # mirrors RelLearnbaleAttention._skew
        b, h, lq, lm = rel.shape
        rel = jnp.pad(rel, ((0, 0), (0, 0), (0, 0), (1, 0)))
        rel = rel.reshape(b, h, lm + 1, lq)[:, :, 1:, :]
        return rel.reshape(b, h, lq, lm)

    def layer(src, mem, lp):
        key = jnp.concatenate([mem, src], axis=1) if mem.shape[1] > 0 else src
        q = src @ lp["wq"].astype(f32) + lp["bq"]
        kvp = key @ lp["wkv"].astype(f32) + lp["bkv"]
        k, v = kvp[..., :D], kvp[..., D:]
        r = pos @ lp["wp"].astype(f32) + lp["bp"]
        Kl = key.shape[1]
        qh = q.reshape(B, Q, H, depth)
        kh = k.reshape(B, Kl, H, depth)
        vh = v.reshape(B, Kl, H, depth)
        rh = r.reshape(Kl, H, depth)
        content = jnp.einsum("blhd,bmhd->bhlm", qh + params["u"][None, None], kh)
        posatt = jnp.einsum("blhd,mhd->bhlm", qh + params["v"][None, None], rh)
        logits = (content + skew(posatt)) / math.sqrt(depth)
        logits = jnp.where(mask[None, None], logits, -1e9)
        w = jax.nn.softmax(logits, axis=-1)
        o = jnp.einsum("bhlm,bmhd->blhd", w, vh).reshape(B, Q, D)
        attn = o @ lp["wo"].astype(f32) + lp["bo"]
        x = ln(src + attn, lp["ln_g"][0], lp["ln_b"][0])
        ff = jnp.maximum(x @ lp["w1"].astype(f32) + lp["b1"], 0.0) \
             @ lp["w2"].astype(f32) + lp["b2"]
        return ln(x + ff, lp["ln_g"][1], lp["ln_b"][1])

    out = tgt
    layer_inputs = []
    for mem, lp in zip(memory, params["layers"]):
        layer_inputs.append(out)
        out = layer(out, mem, lp)
    end = mlen + Q
    start = max(0, end - params["max_mem_length"])
    new_mems = [jnp.concatenate([m, o], axis=1)[:, start:end]
                for m, o in zip(memory, layer_inputs)]
    return out, new_mems


# --------------------------------------------------------------------------
# Parameter init (PyTorch-Linear-style uniform bounds; weights stored bf16)
# --------------------------------------------------------------------------
def init_params(key, d_model, nhead, dim_ff, num_layers, max_mem_length=100):
    depth = d_model // nhead
    keys = jax.random.split(key, num_layers + 1)
    bf16 = jnp.bfloat16

    def linear(k, fan_in, shape):
        bound = 1.0 / math.sqrt(fan_in)
        return jax.random.uniform(k, shape, jnp.float32, -bound, bound)

    layers = []
    for li in range(num_layers):
        ks = jax.random.split(keys[li], 12)
        layers.append({
            "wq": linear(ks[0], d_model, (d_model, d_model)).astype(bf16),
            "bq": linear(ks[1], d_model, (1, d_model)),
            "wkv": linear(ks[2], d_model, (d_model, 2 * d_model)).astype(bf16),
            "bkv": linear(ks[3], d_model, (1, 2 * d_model)),
            "wp": linear(ks[4], d_model, (d_model, d_model)).astype(bf16),
            "bp": linear(ks[5], d_model, (1, d_model)),
            "wo": linear(ks[6], d_model, (d_model, d_model)).astype(bf16),
            "bo": linear(ks[7], d_model, (1, d_model)),
            "w1": linear(ks[8], d_model, (d_model, dim_ff)).astype(bf16),
            "b1": linear(ks[9], d_model, (1, dim_ff)),
            "w2": linear(ks[10], dim_ff, (dim_ff, d_model)).astype(bf16),
            "b2": linear(ks[11], dim_ff, (1, d_model)),
            "ln_g": jnp.ones((2, 1, d_model), jnp.float32),
            "ln_b": jnp.zeros((2, 1, d_model), jnp.float32),
        })
    ku, kvb = jax.random.split(keys[-1])
    std = math.sqrt(2.0 / (nhead + depth))      # xavier_normal_
    return {
        "nhead": nhead,
        "max_mem_length": max_mem_length,
        "u": std * jax.random.normal(ku, (nhead, depth), jnp.float32),
        "v": std * jax.random.normal(kvb, (nhead, depth), jnp.float32),
        "layers": layers,
    }


if __name__ == "__main__":
    B, Q, MLEN, D, H, FF, L = 2, 8, 4, 32, 4, 64, 2
    key = jax.random.PRNGKey(0)
    k_tgt, k_mem, k_par = jax.random.split(key, 3)

    tgt = jax.random.normal(k_tgt, (B, Q, D), jnp.float32)
    mem_keys = jax.random.split(k_mem, L)
    memory = [jax.random.normal(mk, (B, MLEN, D), jnp.float32) for mk in mem_keys]
    params = init_params(k_par, D, H, FF, L)

    out, new_mems = transformer_xl_forward(tgt, memory, params)
    out = jax.block_until_ready(out)

    ref_out, ref_mems = reference_transformer_xl(tgt, memory, params)
    assert out.shape == (B, Q, D)
    # tolerance accounts for bf16 MXU operands + approx softmax reciprocal
    assert jnp.allclose(out, ref_out, atol=2e-2, rtol=2e-2), \
        f"max err {jnp.max(jnp.abs(out - ref_out))}"
    for nm, rm in zip(new_mems, ref_mems):
        assert nm.shape == rm.shape
        assert jnp.allclose(nm, rm, atol=2e-2, rtol=2e-2)

    print("KERNEL_OK")
</pallas_src>

<mosaic_0001>
module attributes {stable_mosaic.version = 11 : i64} {
  func.func @xl_layer_kernel(%arg0: i32, %arg1: memref<1x8x32xf32, #tpu.memory_space<vmem>>, %arg2: memref<1x4x32xf32, #tpu.memory_space<vmem>>, %arg3: memref<4x12x8xbf16, #tpu.memory_space<vmem>>, %arg4: memref<4x1x8xf32, #tpu.memory_space<vmem>>, %arg5: memref<4x1x8xf32, #tpu.memory_space<vmem>>, %arg6: memref<32x32xbf16, #tpu.memory_space<vmem>>, %arg7: memref<1x32xf32, #tpu.memory_space<vmem>>, %arg8: memref<32x64xbf16, #tpu.memory_space<vmem>>, %arg9: memref<1x64xf32, #tpu.memory_space<vmem>>, %arg10: memref<32x32xbf16, #tpu.memory_space<vmem>>, %arg11: memref<1x32xf32, #tpu.memory_space<vmem>>, %arg12: memref<32x64xbf16, #tpu.memory_space<vmem>>, %arg13: memref<1x64xf32, #tpu.memory_space<vmem>>, %arg14: memref<64x32xbf16, #tpu.memory_space<vmem>>, %arg15: memref<1x32xf32, #tpu.memory_space<vmem>>, %arg16: memref<2x1x32xf32, #tpu.memory_space<vmem>>, %arg17: memref<2x1x32xf32, #tpu.memory_space<vmem>>, %arg18: memref<1x8x32xf32, #tpu.memory_space<vmem>>, %arg19: memref<8x32xf32, #tpu.memory_space<vmem>>) attributes {dimension_semantics = [#tpu.dimension_semantics<parallel>], iteration_bounds = array<i64: 2>, scalar_prefetch = 0 : i64, scratch_operands = 1 : i64, tpu.core_type = #tpu.core_type<tc>, window_params = [{transform_indices = @transform_0, window_bounds = array<i64: 1, 8, 32>}, {transform_indices = @transform_1, window_bounds = array<i64: 1, 4, 32>}, {pipeline_mode = #tpu.pipeline_mode<synchronous>, transform_indices = @transform_2, window_bounds = array<i64: 4, 12, 8>}, {pipeline_mode = #tpu.pipeline_mode<synchronous>, transform_indices = @transform_3, window_bounds = array<i64: 4, 1, 8>}, {pipeline_mode = #tpu.pipeline_mode<synchronous>, transform_indices = @transform_4, window_bounds = array<i64: 4, 1, 8>}, {pipeline_mode = #tpu.pipeline_mode<synchronous>, transform_indices = @transform_5, window_bounds = array<i64: 32, 32>}, {pipeline_mode = #tpu.pipeline_mode<synchronous>, transform_indices = @transform_6, window_bounds = array<i64: 1, 32>}, {pipeline_mode = #tpu.pipeline_mode<synchronous>, transform_indices = @transform_7, window_bounds = array<i64: 32, 64>}, {pipeline_mode = #tpu.pipeline_mode<synchronous>, transform_indices = @transform_8, window_bounds = array<i64: 1, 64>}, {pipeline_mode = #tpu.pipeline_mode<synchronous>, transform_indices = @transform_9, window_bounds = array<i64: 32, 32>}, {pipeline_mode = #tpu.pipeline_mode<synchronous>, transform_indices = @transform_10, window_bounds = array<i64: 1, 32>}, {pipeline_mode = #tpu.pipeline_mode<synchronous>, transform_indices = @transform_11, window_bounds = array<i64: 32, 64>}, {pipeline_mode = #tpu.pipeline_mode<synchronous>, transform_indices = @transform_12, window_bounds = array<i64: 1, 64>}, {pipeline_mode = #tpu.pipeline_mode<synchronous>, transform_indices = @transform_13, window_bounds = array<i64: 64, 32>}, {pipeline_mode = #tpu.pipeline_mode<synchronous>, transform_indices = @transform_14, window_bounds = array<i64: 1, 32>}, {pipeline_mode = #tpu.pipeline_mode<synchronous>, transform_indices = @transform_15, window_bounds = array<i64: 2, 1, 32>}, {pipeline_mode = #tpu.pipeline_mode<synchronous>, transform_indices = @transform_16, window_bounds = array<i64: 2, 1, 32>}, {transform_indices = @transform_17, window_bounds = array<i64: 1, 8, 32>}]} {
    %c0 = arith.constant 0 : index
    %c0_0 = arith.constant 0 : index
    %c0_1 = arith.constant 0 : index
    %0 = vector.load %arg1[%c0, %c0_0, %c0_1] : memref<1x8x32xf32, #tpu.memory_space<vmem>>, vector<1x8x32xf32>
    %1 = vector.shape_cast %0 : vector<1x8x32xf32> to vector<8x32xf32>
    %c0_2 = arith.constant 0 : index
    %c0_3 = arith.constant 0 : index
    %c0_4 = arith.constant 0 : index
    %2 = vector.load %arg2[%c0_2, %c0_3, %c0_4] : memref<1x4x32xf32, #tpu.memory_space<vmem>>, vector<1x4x32xf32>
    %3 = vector.shape_cast %2 : vector<1x4x32xf32> to vector<4x32xf32>
    %4 = arith.truncf %1 : vector<8x32xf32> to vector<8x32xbf16>
    %5 = arith.truncf %3 : vector<4x32xf32> to vector<4x32xbf16>
    %c0_5 = arith.constant 0 : index
    %c0_6 = arith.constant 0 : index
    %6 = vector.load %arg6[%c0_5, %c0_6] : memref<32x32xbf16, #tpu.memory_space<vmem>>, vector<32x32xbf16>
    %cst = arith.constant dense<0.000000e+00> : vector<8x32xf32>
    %7 = tpu.matmul %4, %6, %cst {dimension_numbers = #tpu.dot_dimension_numbers<[1], [0], [0], [1], [0, 0, 1, 1], [], []>} : vector<8x32xbf16>, vector<32x32xbf16>, vector<8x32xf32> -> vector<8x32xf32>
    %c0_7 = arith.constant 0 : index
    %c0_8 = arith.constant 0 : index
    %8 = vector.load %arg7[%c0_7, %c0_8] : memref<1x32xf32, #tpu.memory_space<vmem>>, vector<1x32xf32>
    %9 = vector.broadcast %8 : vector<1x32xf32> to vector<8x32xf32>
    %10 = arith.addf %7, %9 : vector<8x32xf32>
    %11 = vector.extract_strided_slice %10 {offsets = [0, 0], sizes = [8, 8], strides = [1, 1]} : vector<8x32xf32> to vector<8x8xf32>
    %12 = vector.extract_strided_slice %10 {offsets = [0, 8], sizes = [8, 8], strides = [1, 1]} : vector<8x32xf32> to vector<8x8xf32>
    %13 = vector.extract_strided_slice %10 {offsets = [0, 16], sizes = [8, 8], strides = [1, 1]} : vector<8x32xf32> to vector<8x8xf32>
    %14 = vector.extract_strided_slice %10 {offsets = [0, 24], sizes = [8, 8], strides = [1, 1]} : vector<8x32xf32> to vector<8x8xf32>
    %15 = vector.shape_cast %11 : vector<8x8xf32> to vector<1x8x8xf32>
    %16 = vector.shape_cast %12 : vector<8x8xf32> to vector<1x8x8xf32>
    %17 = vector.shape_cast %13 : vector<8x8xf32> to vector<1x8x8xf32>
    %18 = vector.shape_cast %14 : vector<8x8xf32> to vector<1x8x8xf32>
    %19 = tpu.concatenate %15, %16, %17, %18 in 0 : vector<1x8x8xf32>, vector<1x8x8xf32>, vector<1x8x8xf32>, vector<1x8x8xf32> -> vector<4x8x8xf32>
    %c0_9 = arith.constant 0 : index
    %c0_10 = arith.constant 0 : index
    %c0_11 = arith.constant 0 : index
    %20 = vector.load %arg4[%c0_9, %c0_10, %c0_11] : memref<4x1x8xf32, #tpu.memory_space<vmem>>, vector<4x1x8xf32>
    %21 = vector.broadcast %20 : vector<4x1x8xf32> to vector<4x8x8xf32>
    %22 = arith.addf %19, %21 : vector<4x8x8xf32>
    %23 = arith.truncf %22 : vector<4x8x8xf32> to vector<4x8x8xbf16>
    %c0_12 = arith.constant 0 : index
    %c0_13 = arith.constant 0 : index
    %c0_14 = arith.constant 0 : index
    %24 = vector.load %arg5[%c0_12, %c0_13, %c0_14] : memref<4x1x8xf32, #tpu.memory_space<vmem>>, vector<4x1x8xf32>
    %25 = vector.broadcast %24 : vector<4x1x8xf32> to vector<4x8x8xf32>
    %26 = arith.addf %19, %25 : vector<4x8x8xf32>
    %27 = arith.truncf %26 : vector<4x8x8xf32> to vector<4x8x8xbf16>
    %c0_15 = arith.constant 0 : index
    %c0_16 = arith.constant 0 : index
    %28 = vector.load %arg8[%c0_15, %c0_16] : memref<32x64xbf16, #tpu.memory_space<vmem>>, vector<32x64xbf16>
    %cst_17 = arith.constant dense<0.000000e+00> : vector<4x64xf32>
    %29 = tpu.matmul %5, %28, %cst_17 {dimension_numbers = #tpu.dot_dimension_numbers<[1], [0], [0], [1], [0, 0, 1, 1], [], []>} : vector<4x32xbf16>, vector<32x64xbf16>, vector<4x64xf32> -> vector<4x64xf32>
    %c0_18 = arith.constant 0 : index
    %c0_19 = arith.constant 0 : index
    %30 = vector.load %arg9[%c0_18, %c0_19] : memref<1x64xf32, #tpu.memory_space<vmem>>, vector<1x64xf32>
    %31 = vector.broadcast %30 : vector<1x64xf32> to vector<4x64xf32>
    %32 = arith.addf %29, %31 : vector<4x64xf32>
    %c0_20 = arith.constant 0 : index
    %c0_21 = arith.constant 0 : index
    %33 = vector.load %arg8[%c0_20, %c0_21] : memref<32x64xbf16, #tpu.memory_space<vmem>>, vector<32x64xbf16>
    %cst_22 = arith.constant dense<0.000000e+00> : vector<8x64xf32>
    %34 = tpu.matmul %4, %33, %cst_22 {dimension_numbers = #tpu.dot_dimension_numbers<[1], [0], [0], [1], [0, 0, 1, 1], [], []>} : vector<8x32xbf16>, vector<32x64xbf16>, vector<8x64xf32> -> vector<8x64xf32>
    %c0_23 = arith.constant 0 : index
    %c0_24 = arith.constant 0 : index
    %35 = vector.load %arg9[%c0_23, %c0_24] : memref<1x64xf32, #tpu.memory_space<vmem>>, vector<1x64xf32>
    %36 = vector.broadcast %35 : vector<1x64xf32> to vector<8x64xf32>
    %37 = arith.addf %34, %36 : vector<8x64xf32>
    %38 = vector.extract_strided_slice %32 {offsets = [0, 0], sizes = [4, 32], strides = [1, 1]} : vector<4x64xf32> to vector<4x32xf32>
    %39 = vector.extract_strided_slice %38 {offsets = [0, 0], sizes = [4, 8], strides = [1, 1]} : vector<4x32xf32> to vector<4x8xf32>
    %40 = vector.extract_strided_slice %38 {offsets = [0, 8], sizes = [4, 8], strides = [1, 1]} : vector<4x32xf32> to vector<4x8xf32>
    %41 = vector.extract_strided_slice %38 {offsets = [0, 16], sizes = [4, 8], strides = [1, 1]} : vector<4x32xf32> to vector<4x8xf32>
    %42 = vector.extract_strided_slice %38 {offsets = [0, 24], sizes = [4, 8], strides = [1, 1]} : vector<4x32xf32> to vector<4x8xf32>
    %43 = vector.shape_cast %39 : vector<4x8xf32> to vector<1x4x8xf32>
    %44 = vector.shape_cast %40 : vector<4x8xf32> to vector<1x4x8xf32>
    %45 = vector.shape_cast %41 : vector<4x8xf32> to vector<1x4x8xf32>
    %46 = vector.shape_cast %42 : vector<4x8xf32> to vector<1x4x8xf32>
    %47 = tpu.concatenate %43, %44, %45, %46 in 0 : vector<1x4x8xf32>, vector<1x4x8xf32>, vector<1x4x8xf32>, vector<1x4x8xf32> -> vector<4x4x8xf32>
    %48 = arith.truncf %47 : vector<4x4x8xf32> to vector<4x4x8xbf16>
    %49 = vector.extract_strided_slice %32 {offsets = [0, 32], sizes = [4, 32], strides = [1, 1]} : vector<4x64xf32> to vector<4x32xf32>
    %50 = vector.extract_strided_slice %49 {offsets = [0, 0], sizes = [4, 8], strides = [1, 1]} : vector<4x32xf32> to vector<4x8xf32>
    %51 = vector.extract_strided_slice %49 {offsets = [0, 8], sizes = [4, 8], strides = [1, 1]} : vector<4x32xf32> to vector<4x8xf32>
    %52 = vector.extract_strided_slice %49 {offsets = [0, 16], sizes = [4, 8], strides = [1, 1]} : vector<4x32xf32> to vector<4x8xf32>
    %53 = vector.extract_strided_slice %49 {offsets = [0, 24], sizes = [4, 8], strides = [1, 1]} : vector<4x32xf32> to vector<4x8xf32>
    %54 = vector.shape_cast %50 : vector<4x8xf32> to vector<1x4x8xf32>
    %55 = vector.shape_cast %51 : vector<4x8xf32> to vector<1x4x8xf32>
    %56 = vector.shape_cast %52 : vector<4x8xf32> to vector<1x4x8xf32>
    %57 = vector.shape_cast %53 : vector<4x8xf32> to vector<1x4x8xf32>
    %58 = tpu.concatenate %54, %55, %56, %57 in 0 : vector<1x4x8xf32>, vector<1x4x8xf32>, vector<1x4x8xf32>, vector<1x4x8xf32> -> vector<4x4x8xf32>
    %59 = arith.truncf %58 : vector<4x4x8xf32> to vector<4x4x8xbf16>
    %60 = vector.extract_strided_slice %37 {offsets = [0, 0], sizes = [8, 32], strides = [1, 1]} : vector<8x64xf32> to vector<8x32xf32>
    %61 = vector.extract_strided_slice %60 {offsets = [0, 0], sizes = [8, 8], strides = [1, 1]} : vector<8x32xf32> to vector<8x8xf32>
    %62 = vector.extract_strided_slice %60 {offsets = [0, 8], sizes = [8, 8], strides = [1, 1]} : vector<8x32xf32> to vector<8x8xf32>
    %63 = vector.extract_strided_slice %60 {offsets = [0, 16], sizes = [8, 8], strides = [1, 1]} : vector<8x32xf32> to vector<8x8xf32>
    %64 = vector.extract_strided_slice %60 {offsets = [0, 24], sizes = [8, 8], strides = [1, 1]} : vector<8x32xf32> to vector<8x8xf32>
    %65 = vector.shape_cast %61 : vector<8x8xf32> to vector<1x8x8xf32>
    %66 = vector.shape_cast %62 : vector<8x8xf32> to vector<1x8x8xf32>
    %67 = vector.shape_cast %63 : vector<8x8xf32> to vector<1x8x8xf32>
    %68 = vector.shape_cast %64 : vector<8x8xf32> to vector<1x8x8xf32>
    %69 = tpu.concatenate %65, %66, %67, %68 in 0 : vector<1x8x8xf32>, vector<1x8x8xf32>, vector<1x8x8xf32>, vector<1x8x8xf32> -> vector<4x8x8xf32>
    %70 = arith.truncf %69 : vector<4x8x8xf32> to vector<4x8x8xbf16>
    %71 = vector.extract_strided_slice %37 {offsets = [0, 32], sizes = [8, 32], strides = [1, 1]} : vector<8x64xf32> to vector<8x32xf32>
    %72 = vector.extract_strided_slice %71 {offsets = [0, 0], sizes = [8, 8], strides = [1, 1]} : vector<8x32xf32> to vector<8x8xf32>
    %73 = vector.extract_strided_slice %71 {offsets = [0, 8], sizes = [8, 8], strides = [1, 1]} : vector<8x32xf32> to vector<8x8xf32>
    %74 = vector.extract_strided_slice %71 {offsets = [0, 16], sizes = [8, 8], strides = [1, 1]} : vector<8x32xf32> to vector<8x8xf32>
    %75 = vector.extract_strided_slice %71 {offsets = [0, 24], sizes = [8, 8], strides = [1, 1]} : vector<8x32xf32> to vector<8x8xf32>
    %76 = vector.shape_cast %72 : vector<8x8xf32> to vector<1x8x8xf32>
    %77 = vector.shape_cast %73 : vector<8x8xf32> to vector<1x8x8xf32>
    %78 = vector.shape_cast %74 : vector<8x8xf32> to vector<1x8x8xf32>
    %79 = vector.shape_cast %75 : vector<8x8xf32> to vector<1x8x8xf32>
    %80 = tpu.concatenate %76, %77, %78, %79 in 0 : vector<1x8x8xf32>, vector<1x8x8xf32>, vector<1x8x8xf32>, vector<1x8x8xf32> -> vector<4x8x8xf32>
    %81 = arith.truncf %80 : vector<4x8x8xf32> to vector<4x8x8xbf16>
    "tpu.trace_start"() <{level = 10 : i32, message = "hqd,hkd->hqk"}> : () -> ()
    %cst_25 = arith.constant dense<0.000000e+00> : vector<4x8x4xf32>
    %82 = tpu.matmul %23, %48, %cst_25 {dimension_numbers = #tpu.dot_dimension_numbers<[2], [2], [1], [1], [0, 0, 0, 1, 1, 1], [0], [0]>} : vector<4x8x8xbf16>, vector<4x4x8xbf16>, vector<4x8x4xf32> -> vector<4x8x4xf32>
    %cst_26 = arith.constant dense<0.000000e+00> : vector<4x8x8xf32>
    %83 = tpu.matmul %23, %70, %cst_26 {dimension_numbers = #tpu.dot_dimension_numbers<[2], [2], [1], [1], [0, 0, 0, 1, 1, 1], [0], [0]>} : vector<4x8x8xbf16>, vector<4x8x8xbf16>, vector<4x8x8xf32> -> vector<4x8x8xf32>
    "tpu.trace_stop"() : () -> ()
    %84 = tpu.concatenate %82, %83 in 2 : vector<4x8x4xf32>, vector<4x8x8xf32> -> vector<4x8x12xf32>
    %c0_27 = arith.constant 0 : index
    %c0_28 = arith.constant 0 : index
    %c0_29 = arith.constant 0 : index
    %85 = vector.load %arg3[%c0_27, %c0_28, %c0_29] : memref<4x12x8xbf16, #tpu.memory_space<vmem>>, vector<4x12x8xbf16>
    "tpu.trace_start"() <{level = 10 : i32, message = "hqd,hkd->hqk"}> : () -> ()
    %cst_30 = arith.constant dense<0.000000e+00> : vector<4x8x12xf32>
    %86 = tpu.matmul %27, %85, %cst_30 {dimension_numbers = #tpu.dot_dimension_numbers<[2], [2], [1], [1], [0, 0, 0, 1, 1, 1], [0], [0]>} : vector<4x8x8xbf16>, vector<4x12x8xbf16>, vector<4x8x12xf32> -> vector<4x8x12xf32>
    "tpu.trace_stop"() : () -> ()
    %87 = tpu.iota {dimensions = array<i32: 1>} : vector<4x8x12xi32>
    %88 = tpu.iota {dimensions = array<i32: 2>} : vector<4x8x12xi32>
    %c7_i32 = arith.constant 7 : i32
    %89 = vector.broadcast %c7_i32 : i32 to vector<4x8x12xi32>
    %90 = arith.subi %89, %87 : vector<4x8x12xi32>
    %91 = vector.extract_strided_slice %86 {offsets = [0, 0, 1], sizes = [4, 8, 11], strides = [1, 1, 1]} : vector<4x8x12xf32> to vector<4x8x11xf32>
    %92 = vector.extract_strided_slice %86 {offsets = [0, 0, 0], sizes = [4, 8, 1], strides = [1, 1, 1]} : vector<4x8x12xf32> to vector<4x8x1xf32>
    %93 = tpu.concatenate %91, %92 in 2 : vector<4x8x11xf32>, vector<4x8x1xf32> -> vector<4x8x12xf32>
    %c1_i32 = arith.constant 1 : i32
    %94 = vector.broadcast %c1_i32 : i32 to vector<4x8x12xi32>
    %95 = arith.andi %90, %94 : vector<4x8x12xi32>
    %c0_i32 = arith.constant 0 : i32
    %96 = vector.broadcast %c0_i32 : i32 to vector<4x8x12xi32>
    %97 = arith.cmpi ne, %95, %96 : vector<4x8x12xi32>
    %98 = arith.select %97, %93, %86 : vector<4x8x12xi1>, vector<4x8x12xf32>
    %99 = vector.extract_strided_slice %98 {offsets = [0, 0, 2], sizes = [4, 8, 10], strides = [1, 1, 1]} : vector<4x8x12xf32> to vector<4x8x10xf32>
    %100 = vector.extract_strided_slice %98 {offsets = [0, 0, 0], sizes = [4, 8, 2], strides = [1, 1, 1]} : vector<4x8x12xf32> to vector<4x8x2xf32>
    %101 = tpu.concatenate %99, %100 in 2 : vector<4x8x10xf32>, vector<4x8x2xf32> -> vector<4x8x12xf32>
    %c2_i32 = arith.constant 2 : i32
    %102 = vector.broadcast %c2_i32 : i32 to vector<4x8x12xi32>
    %103 = arith.andi %90, %102 : vector<4x8x12xi32>
    %c0_i32_31 = arith.constant 0 : i32
    %104 = vector.broadcast %c0_i32_31 : i32 to vector<4x8x12xi32>
    %105 = arith.cmpi ne, %103, %104 : vector<4x8x12xi32>
    %106 = arith.select %105, %101, %98 : vector<4x8x12xi1>, vector<4x8x12xf32>
    %107 = vector.extract_strided_slice %106 {offsets = [0, 0, 4], sizes = [4, 8, 8], strides = [1, 1, 1]} : vector<4x8x12xf32> to vector<4x8x8xf32>
    %108 = vector.extract_strided_slice %106 {offsets = [0, 0, 0], sizes = [4, 8, 4], strides = [1, 1, 1]} : vector<4x8x12xf32> to vector<4x8x4xf32>
    %109 = tpu.concatenate %107, %108 in 2 : vector<4x8x8xf32>, vector<4x8x4xf32> -> vector<4x8x12xf32>
    %c4_i32 = arith.constant 4 : i32
    %110 = vector.broadcast %c4_i32 : i32 to vector<4x8x12xi32>
    %111 = arith.andi %90, %110 : vector<4x8x12xi32>
    %c0_i32_32 = arith.constant 0 : i32
    %112 = vector.broadcast %c0_i32_32 : i32 to vector<4x8x12xi32>
    %113 = arith.cmpi ne, %111, %112 : vector<4x8x12xi32>
    %114 = arith.select %113, %109, %106 : vector<4x8x12xi1>, vector<4x8x12xf32>
    %c4_i32_33 = arith.constant 4 : i32
    %115 = vector.broadcast %c4_i32_33 : i32 to vector<4x8x12xi32>
    %116 = arith.addi %87, %115 : vector<4x8x12xi32>
    %117 = arith.cmpi sle, %88, %116 : vector<4x8x12xi32>
    %118 = arith.addf %84, %114 : vector<4x8x12xf32>
    %cst_34 = arith.constant -1.000000e+09 : f32
    %119 = vector.broadcast %cst_34 : f32 to vector<4x8x12xf32>
    %120 = arith.select %117, %118, %119 : vector<4x8x12xi1>, vector<4x8x12xf32>
    %cst_35 = arith.constant dense<0xFF800000> : vector<4x8xf32>
    %121 = vector.multi_reduction <maximumf>, %120, %cst_35 [2] : vector<4x8x12xf32> to vector<4x8xf32>
    %122 = vector.shape_cast %121 : vector<4x8xf32> to vector<4x8x1xf32>
    %123 = vector.broadcast %122 : vector<4x8x1xf32> to vector<4x8x12xf32>
    %124 = arith.subf %120, %123 : vector<4x8x12xf32>
    %125 = math.exp %124 : vector<4x8x12xf32>
    %cst_36 = arith.constant dense<0.000000e+00> : vector<4x8xf32>
    %126 = vector.multi_reduction <add>, %125, %cst_36 [2] : vector<4x8x12xf32> to vector<4x8xf32>
    %127 = vector.shape_cast %126 : vector<4x8xf32> to vector<4x8x1xf32>
    %128 = tpu.reciprocal %127 {approx = true} : vector<4x8x1xf32> -> vector<4x8x1xf32>
    %129 = vector.broadcast %128 : vector<4x8x1xf32> to vector<4x8x12xf32>
    %130 = arith.mulf %125, %129 : vector<4x8x12xf32>
    %131 = arith.truncf %130 : vector<4x8x12xf32> to vector<4x8x12xbf16>
    %132 = vector.extract_strided_slice %131 {offsets = [0, 0, 0], sizes = [4, 8, 4], strides = [1, 1, 1]} : vector<4x8x12xbf16> to vector<4x8x4xbf16>
    "tpu.trace_start"() <{level = 10 : i32, message = "hqk,hkd->hqd"}> : () -> ()
    %cst_37 = arith.constant dense<0.000000e+00> : vector<4x8x8xf32>
    %133 = tpu.matmul %132, %59, %cst_37 {dimension_numbers = #tpu.dot_dimension_numbers<[2], [1], [1], [2], [0, 0, 0, 1, 1, 2], [0], [0]>} : vector<4x8x4xbf16>, vector<4x4x8xbf16>, vector<4x8x8xf32> -> vector<4x8x8xf32>
    "tpu.trace_stop"() : () -> ()
    %134 = vector.extract_strided_slice %131 {offsets = [0, 0, 4], sizes = [4, 8, 8], strides = [1, 1, 1]} : vector<4x8x12xbf16> to vector<4x8x8xbf16>
    "tpu.trace_start"() <{level = 10 : i32, message = "hqk,hkd->hqd"}> : () -> ()
    %cst_38 = arith.constant dense<0.000000e+00> : vector<4x8x8xf32>
    %135 = tpu.matmul %134, %81, %cst_38 {dimension_numbers = #tpu.dot_dimension_numbers<[2], [1], [1], [2], [0, 0, 0, 1, 1, 2], [0], [0]>} : vector<4x8x8xbf16>, vector<4x8x8xbf16>, vector<4x8x8xf32> -> vector<4x8x8xf32>
    "tpu.trace_stop"() : () -> ()
    %136 = arith.addf %133, %135 : vector<4x8x8xf32>
    %137 = vector.extract_strided_slice %136 {offsets = [0, 0, 0], sizes = [1, 8, 8], strides = [1, 1, 1]} : vector<4x8x8xf32> to vector<1x8x8xf32>
    %138 = vector.shape_cast %137 : vector<1x8x8xf32> to vector<8x8xf32>
    %c0_39 = arith.constant 0 : index
    %c0_40 = arith.constant 0 : index
    %139 = vector.load %arg19[%c0_39, %c0_40] : memref<8x32xf32, #tpu.memory_space<vmem>>, vector<8x8xf32>
    tpu.vector_store %arg19[%c0_39, %c0_40], %138 {strides = array<i32>} : memref<8x32xf32, #tpu.memory_space<vmem>>, vector<8x8xf32>,
    %140 = vector.extract_strided_slice %136 {offsets = [1, 0, 0], sizes = [1, 8, 8], strides = [1, 1, 1]} : vector<4x8x8xf32> to vector<1x8x8xf32>
    %141 = vector.shape_cast %140 : vector<1x8x8xf32> to vector<8x8xf32>
    %c0_41 = arith.constant 0 : index
    %c8 = arith.constant 8 : index
    %142 = vector.load %arg19[%c0_41, %c8] : memref<8x32xf32, #tpu.memory_space<vmem>>, vector<8x8xf32>
    tpu.vector_store %arg19[%c0_41, %c8], %141 {strides = array<i32>} : memref<8x32xf32, #tpu.memory_space<vmem>>, vector<8x8xf32>,
    %143 = vector.extract_strided_slice %136 {offsets = [2, 0, 0], sizes = [1, 8, 8], strides = [1, 1, 1]} : vector<4x8x8xf32> to vector<1x8x8xf32>
    %144 = vector.shape_cast %143 : vector<1x8x8xf32> to vector<8x8xf32>
    %c0_42 = arith.constant 0 : index
    %c16 = arith.constant 16 : index
    %145 = vector.load %arg19[%c0_42, %c16] : memref<8x32xf32, #tpu.memory_space<vmem>>, vector<8x8xf32>
    tpu.vector_store %arg19[%c0_42, %c16], %144 {strides = array<i32>} : memref<8x32xf32, #tpu.memory_space<vmem>>, vector<8x8xf32>,
    %146 = vector.extract_strided_slice %136 {offsets = [3, 0, 0], sizes = [1, 8, 8], strides = [1, 1, 1]} : vector<4x8x8xf32> to vector<1x8x8xf32>
    %147 = vector.shape_cast %146 : vector<1x8x8xf32> to vector<8x8xf32>
    %c0_43 = arith.constant 0 : index
    %c24 = arith.constant 24 : index
    %148 = vector.load %arg19[%c0_43, %c24] : memref<8x32xf32, #tpu.memory_space<vmem>>, vector<8x8xf32>
    tpu.vector_store %arg19[%c0_43, %c24], %147 {strides = array<i32>} : memref<8x32xf32, #tpu.memory_space<vmem>>, vector<8x8xf32>,
    %c0_44 = arith.constant 0 : index
    %c0_45 = arith.constant 0 : index
    %149 = vector.load %arg19[%c0_44, %c0_45] : memref<8x32xf32, #tpu.memory_space<vmem>>, vector<8x32xf32>
    %150 = arith.truncf %149 : vector<8x32xf32> to vector<8x32xbf16>
    %c0_46 = arith.constant 0 : index
    %c0_47 = arith.constant 0 : index
    %151 = vector.load %arg10[%c0_46, %c0_47] : memref<32x32xbf16, #tpu.memory_space<vmem>>, vector<32x32xbf16>
    %cst_48 = arith.constant dense<0.000000e+00> : vector<8x32xf32>
    %152 = tpu.matmul %150, %151, %cst_48 {dimension_numbers = #tpu.dot_dimension_numbers<[1], [0], [0], [1], [0, 0, 1, 1], [], []>} : vector<8x32xbf16>, vector<32x32xbf16>, vector<8x32xf32> -> vector<8x32xf32>
    %c0_49 = arith.constant 0 : index
    %c0_50 = arith.constant 0 : index
    %153 = vector.load %arg11[%c0_49, %c0_50] : memref<1x32xf32, #tpu.memory_space<vmem>>, vector<1x32xf32>
    %154 = vector.broadcast %153 : vector<1x32xf32> to vector<8x32xf32>
    %155 = arith.addf %152, %154 : vector<8x32xf32>
    %156 = arith.addf %1, %155 : vector<8x32xf32>
    %c0_51 = arith.constant 0 : index
    %c0_52 = arith.constant 0 : index
    %c0_53 = arith.constant 0 : index
    %157 = vector.load %arg16[%c0_51, %c0_52, %c0_53] : memref<2x1x32xf32, #tpu.memory_space<vmem>>, vector<1x1x32xf32>
    %158 = vector.shape_cast %157 : vector<1x1x32xf32> to vector<1x32xf32>
    %c0_54 = arith.constant 0 : index
    %c0_55 = arith.constant 0 : index
    %c0_56 = arith.constant 0 : index
    %159 = vector.load %arg17[%c0_54, %c0_55, %c0_56] : memref<2x1x32xf32, #tpu.memory_space<vmem>>, vector<1x1x32xf32>
    %160 = vector.shape_cast %159 : vector<1x1x32xf32> to vector<1x32xf32>
    %cst_57 = arith.constant dense<0.000000e+00> : vector<8xf32>
    %161 = vector.multi_reduction <add>, %156, %cst_57 [1] : vector<8x32xf32> to vector<8xf32>
    %162 = vector.shape_cast %161 : vector<8xf32> to vector<8x1xf32>
    %cst_58 = arith.constant 3.200000e+01 : f32
    %163 = vector.broadcast %cst_58 : f32 to vector<8x1xf32>
    %164 = arith.divf %162, %163 : vector<8x1xf32>
    %165 = vector.broadcast %164 : vector<8x1xf32> to vector<8x32xf32>
    %166 = arith.subf %156, %165 : vector<8x32xf32>
    %167 = arith.mulf %166, %166 : vector<8x32xf32>
    %cst_59 = arith.constant dense<0.000000e+00> : vector<8xf32>
    %168 = vector.multi_reduction <add>, %167, %cst_59 [1] : vector<8x32xf32> to vector<8xf32>
    %169 = vector.shape_cast %168 : vector<8xf32> to vector<8x1xf32>
    %cst_60 = arith.constant 3.200000e+01 : f32
    %170 = vector.broadcast %cst_60 : f32 to vector<8x1xf32>
    %171 = arith.divf %169, %170 : vector<8x1xf32>
    %172 = vector.broadcast %164 : vector<8x1xf32> to vector<8x32xf32>
    %173 = arith.subf %156, %172 : vector<8x32xf32>
    %cst_61 = arith.constant 9.99999974E-6 : f32
    %174 = vector.broadcast %cst_61 : f32 to vector<8x1xf32>
    %175 = arith.addf %171, %174 : vector<8x1xf32>
    %176 = math.rsqrt %175 : vector<8x1xf32>
    %177 = vector.broadcast %176 : vector<8x1xf32> to vector<8x32xf32>
    %178 = arith.mulf %173, %177 : vector<8x32xf32>
    %179 = vector.broadcast %158 : vector<1x32xf32> to vector<8x32xf32>
    %180 = arith.mulf %178, %179 : vector<8x32xf32>
    %181 = vector.broadcast %160 : vector<1x32xf32> to vector<8x32xf32>
    %182 = arith.addf %180, %181 : vector<8x32xf32>
    %183 = arith.truncf %182 : vector<8x32xf32> to vector<8x32xbf16>
    %c0_62 = arith.constant 0 : index
    %c0_63 = arith.constant 0 : index
    %184 = vector.load %arg12[%c0_62, %c0_63] : memref<32x64xbf16, #tpu.memory_space<vmem>>, vector<32x64xbf16>
    %cst_64 = arith.constant dense<0.000000e+00> : vector<8x64xf32>
    %185 = tpu.matmul %183, %184, %cst_64 {dimension_numbers = #tpu.dot_dimension_numbers<[1], [0], [0], [1], [0, 0, 1, 1], [], []>} : vector<8x32xbf16>, vector<32x64xbf16>, vector<8x64xf32> -> vector<8x64xf32>
    %c0_65 = arith.constant 0 : index
    %c0_66 = arith.constant 0 : index
    %186 = vector.load %arg13[%c0_65, %c0_66] : memref<1x64xf32, #tpu.memory_space<vmem>>, vector<1x64xf32>
    %187 = vector.broadcast %186 : vector<1x64xf32> to vector<8x64xf32>
    %188 = arith.addf %185, %187 : vector<8x64xf32>
    %cst_67 = arith.constant 0.000000e+00 : f32
    %189 = vector.broadcast %cst_67 : f32 to vector<8x64xf32>
    %190 = arith.maximumf %188, %189 : vector<8x64xf32>
    %191 = arith.truncf %190 : vector<8x64xf32> to vector<8x64xbf16>
    %c0_68 = arith.constant 0 : index
    %c0_69 = arith.constant 0 : index
    %192 = vector.load %arg14[%c0_68, %c0_69] : memref<64x32xbf16, #tpu.memory_space<vmem>>, vector<64x32xbf16>
    %cst_70 = arith.constant dense<0.000000e+00> : vector<8x32xf32>
    %193 = tpu.matmul %191, %192, %cst_70 {dimension_numbers = #tpu.dot_dimension_numbers<[1], [0], [0], [1], [0, 0, 1, 1], [], []>} : vector<8x64xbf16>, vector<64x32xbf16>, vector<8x32xf32> -> vector<8x32xf32>
    %c0_71 = arith.constant 0 : index
    %c0_72 = arith.constant 0 : index
    %194 = vector.load %arg15[%c0_71, %c0_72] : memref<1x32xf32, #tpu.memory_space<vmem>>, vector<1x32xf32>
    %195 = vector.broadcast %194 : vector<1x32xf32> to vector<8x32xf32>
    %196 = arith.addf %193, %195 : vector<8x32xf32>
    %197 = arith.addf %182, %196 : vector<8x32xf32>
    %c1 = arith.constant 1 : index
    %c0_73 = arith.constant 0 : index
    %c0_74 = arith.constant 0 : index
    %198 = vector.load %arg16[%c1, %c0_73, %c0_74] : memref<2x1x32xf32, #tpu.memory_space<vmem>>, vector<1x1x32xf32>
    %199 = vector.shape_cast %198 : vector<1x1x32xf32> to vector<1x32xf32>
    %c1_75 = arith.constant 1 : index
    %c0_76 = arith.constant 0 : index
    %c0_77 = arith.constant 0 : index
    %200 = vector.load %arg17[%c1_75, %c0_76, %c0_77] : memref<2x1x32xf32, #tpu.memory_space<vmem>>, vector<1x1x32xf32>
    %201 = vector.shape_cast %200 : vector<1x1x32xf32> to vector<1x32xf32>
    %cst_78 = arith.constant dense<0.000000e+00> : vector<8xf32>
    %202 = vector.multi_reduction <add>, %197, %cst_78 [1] : vector<8x32xf32> to vector<8xf32>
    %203 = vector.shape_cast %202 : vector<8xf32> to vector<8x1xf32>
    %cst_79 = arith.constant 3.200000e+01 : f32
    %204 = vector.broadcast %cst_79 : f32 to vector<8x1xf32>
    %205 = arith.divf %203, %204 : vector<8x1xf32>
    %206 = vector.broadcast %205 : vector<8x1xf32> to vector<8x32xf32>
    %207 = arith.subf %197, %206 : vector<8x32xf32>
    %208 = arith.mulf %207, %207 : vector<8x32xf32>
    %cst_80 = arith.constant dense<0.000000e+00> : vector<8xf32>
    %209 = vector.multi_reduction <add>, %208, %cst_80 [1] : vector<8x32xf32> to vector<8xf32>
    %210 = vector.shape_cast %209 : vector<8xf32> to vector<8x1xf32>
    %cst_81 = arith.constant 3.200000e+01 : f32
    %211 = vector.broadcast %cst_81 : f32 to vector<8x1xf32>
    %212 = arith.divf %210, %211 : vector<8x1xf32>
    %213 = vector.broadcast %205 : vector<8x1xf32> to vector<8x32xf32>
    %214 = arith.subf %197, %213 : vector<8x32xf32>
    %cst_82 = arith.constant 9.99999974E-6 : f32
    %215 = vector.broadcast %cst_82 : f32 to vector<8x1xf32>
    %216 = arith.addf %212, %215 : vector<8x1xf32>
    %217 = math.rsqrt %216 : vector<8x1xf32>
    %218 = vector.broadcast %217 : vector<8x1xf32> to vector<8x32xf32>
    %219 = arith.mulf %214, %218 : vector<8x32xf32>
    %220 = vector.broadcast %199 : vector<1x32xf32> to vector<8x32xf32>
    %221 = arith.mulf %219, %220 : vector<8x32xf32>
    %222 = vector.broadcast %201 : vector<1x32xf32> to vector<8x32xf32>
    %223 = arith.addf %221, %222 : vector<8x32xf32>
    %c0_83 = arith.constant 0 : index
    %c0_84 = arith.constant 0 : index
    %c0_85 = arith.constant 0 : index
    %224 = vector.load %arg18[%c0_83, %c0_84, %c0_85] : memref<1x8x32xf32, #tpu.memory_space<vmem>>, vector<1x8x32xf32>
    %225 = vector.shape_cast %224 : vector<1x8x32xf32> to vector<8x32xf32>
    %226 = vector.shape_cast %223 : vector<8x32xf32> to vector<1x8x32xf32>
    tpu.vector_store %arg18[%c0_83, %c0_84, %c0_85], %226 {strides = array<i32>} : memref<1x8x32xf32, #tpu.memory_space<vmem>>, vector<1x8x32xf32>,
    return
  }
  func.func @transform_0(%arg0: i32) -> (i32, i32, i32) {
    %c0_i32 = arith.constant 0 : i32
    %c0_i32_0 = arith.constant 0 : i32
    %c0_i32_1 = arith.constant 0 : i32
    return %arg0, %c0_i32, %c0_i32_0 : i32, i32, i32
  }
  func.func @transform_1(%arg0: i32) -> (i32, i32, i32) {
    %c0_i32 = arith.constant 0 : i32
    %c0_i32_0 = arith.constant 0 : i32
    %c0_i32_1 = arith.constant 0 : i32
    return %arg0, %c0_i32, %c0_i32_0 : i32, i32, i32
  }
  func.func @transform_2(%arg0: i32) -> (i32, i32, i32) {
    %c0_i32 = arith.constant 0 : i32
    %c0_i32_0 = arith.constant 0 : i32
    %c0_i32_1 = arith.constant 0 : i32
    %c0_i32_2 = arith.constant 0 : i32
    return %c0_i32, %c0_i32_0, %c0_i32_1 : i32, i32, i32
  }
  func.func @transform_3(%arg0: i32) -> (i32, i32, i32) {
    %c0_i32 = arith.constant 0 : i32
    %c0_i32_0 = arith.constant 0 : i32
    %c0_i32_1 = arith.constant 0 : i32
    %c0_i32_2 = arith.constant 0 : i32
    return %c0_i32, %c0_i32_0, %c0_i32_1 : i32, i32, i32
  }
  func.func @transform_4(%arg0: i32) -> (i32, i32, i32) {
    %c0_i32 = arith.constant 0 : i32
    %c0_i32_0 = arith.constant 0 : i32
    %c0_i32_1 = arith.constant 0 : i32
    %c0_i32_2 = arith.constant 0 : i32
    return %c0_i32, %c0_i32_0, %c0_i32_1 : i32, i32, i32
  }
  func.func @transform_5(%arg0: i32) -> (i32, i32) {
    %c0_i32 = arith.constant 0 : i32
    %c0_i32_0 = arith.constant 0 : i32
    %c0_i32_1 = arith.constant 0 : i32
    return %c0_i32, %c0_i32_0 : i32, i32
  }
  func.func @transform_6(%arg0: i32) -> (i32, i32) {
    %c0_i32 = arith.constant 0 : i32
    %c0_i32_0 = arith.constant 0 : i32
    %c0_i32_1 = arith.constant 0 : i32
    return %c0_i32, %c0_i32_0 : i32, i32
  }
  func.func @transform_7(%arg0: i32) -> (i32, i32) {
    %c0_i32 = arith.constant 0 : i32
    %c0_i32_0 = arith.constant 0 : i32
    %c0_i32_1 = arith.constant 0 : i32
    return %c0_i32, %c0_i32_0 : i32, i32
  }
  func.func @transform_8(%arg0: i32) -> (i32, i32) {
    %c0_i32 = arith.constant 0 : i32
    %c0_i32_0 = arith.constant 0 : i32
    %c0_i32_1 = arith.constant 0 : i32
    return %c0_i32, %c0_i32_0 : i32, i32
  }
  func.func @transform_9(%arg0: i32) -> (i32, i32) {
    %c0_i32 = arith.constant 0 : i32
    %c0_i32_0 = arith.constant 0 : i32
    %c0_i32_1 = arith.constant 0 : i32
    return %c0_i32, %c0_i32_0 : i32, i32
  }
  func.func @transform_10(%arg0: i32) -> (i32, i32) {
    %c0_i32 = arith.constant 0 : i32
    %c0_i32_0 = arith.constant 0 : i32
    %c0_i32_1 = arith.constant 0 : i32
    return %c0_i32, %c0_i32_0 : i32, i32
  }
  func.func @transform_11(%arg0: i32) -> (i32, i32) {
    %c0_i32 = arith.constant 0 : i32
    %c0_i32_0 = arith.constant 0 : i32
    %c0_i32_1 = arith.constant 0 : i32
    return %c0_i32, %c0_i32_0 : i32, i32
  }
  func.func @transform_12(%arg0: i32) -> (i32, i32) {
    %c0_i32 = arith.constant 0 : i32
    %c0_i32_0 = arith.constant 0 : i32
    %c0_i32_1 = arith.constant 0 : i32
    return %c0_i32, %c0_i32_0 : i32, i32
  }
  func.func @transform_13(%arg0: i32) -> (i32, i32) {
    %c0_i32 = arith.constant 0 : i32
    %c0_i32_0 = arith.constant 0 : i32
    %c0_i32_1 = arith.constant 0 : i32
    return %c0_i32, %c0_i32_0 : i32, i32
  }
  func.func @transform_14(%arg0: i32) -> (i32, i32) {
    %c0_i32 = arith.constant 0 : i32
    %c0_i32_0 = arith.constant 0 : i32
    %c0_i32_1 = arith.constant 0 : i32
    return %c0_i32, %c0_i32_0 : i32, i32
  }
  func.func @transform_15(%arg0: i32) -> (i32, i32, i32) {
    %c0_i32 = arith.constant 0 : i32
    %c0_i32_0 = arith.constant 0 : i32
    %c0_i32_1 = arith.constant 0 : i32
    %c0_i32_2 = arith.constant 0 : i32
    return %c0_i32, %c0_i32_0, %c0_i32_1 : i32, i32, i32
  }
  func.func @transform_16(%arg0: i32) -> (i32, i32, i32) {
    %c0_i32 = arith.constant 0 : i32
    %c0_i32_0 = arith.constant 0 : i32
    %c0_i32_1 = arith.constant 0 : i32
    %c0_i32_2 = arith.constant 0 : i32
    return %c0_i32, %c0_i32_0, %c0_i32_1 : i32, i32, i32
  }
  func.func @transform_17(%arg0: i32) -> (i32, i32, i32) {
    %c0_i32 = arith.constant 0 : i32
    %c0_i32_0 = arith.constant 0 : i32
    %c0_i32_1 = arith.constant 0 : i32
    return %arg0, %c0_i32, %c0_i32_0 : i32, i32, i32
  }
}

</mosaic_0001>

<llo_original>
// kernel: tpu_custom_call.1
$region0: #{tpu_custom_call.1}
  #allocation0 [shape = 'u32[]', space=smem, size = 0x4, offset = 0x4, fixed_abs, tag = 'smem constant byte address 0x4 - core index']
  #allocation1 [shape = 'u32[72,128]{1,0:T(1,128)}', space=vmem, size = 0x9000, scoped, tag = 'internal scratch']
  #allocation2 [shape = 'f32[8,32]{1,0:T(8,128)}', space=vmem, size = 0x1000, scoped, tag = 'scratch operand']
  %s0 = inlined_call_operand.vmem [shape: f32[2,8,32], index: 0, kind: input, shape index: {}]
  %s1 = inlined_call_operand.hbm [shape: f32[2,4,32], index: 1, kind: input, shape index: {}]
  %s2 = inlined_call_operand.vmem [shape: bf16[4,12,8], index: 2, kind: input, shape index: {}]
  %s3 = inlined_call_operand.hbm [shape: f32[4,1,8], index: 3, kind: input, shape index: {}]
  %s4 = inlined_call_operand.hbm [shape: f32[4,1,8], index: 4, kind: input, shape index: {}]
  %s5 = inlined_call_operand.vmem [shape: bf16[32,32], index: 5, kind: input, shape index: {}]
  %s6 = inlined_call_operand.vmem [shape: f32[1,32], index: 6, kind: input, shape index: {}]
  %s7 = inlined_call_operand.vmem [shape: bf16[32,64], index: 7, kind: input, shape index: {}]
  %s8 = inlined_call_operand.vmem [shape: f32[1,64], index: 8, kind: input, shape index: {}]
  %s9 = inlined_call_operand.vmem [shape: bf16[32,32], index: 9, kind: input, shape index: {}]
  %s10 = inlined_call_operand.vmem [shape: f32[1,32], index: 10, kind: input, shape index: {}]
  %s11 = inlined_call_operand.vmem [shape: bf16[32,64], index: 11, kind: input, shape index: {}]
  %s12 = inlined_call_operand.vmem [shape: f32[1,64], index: 12, kind: input, shape index: {}]
  %s13 = inlined_call_operand.vmem [shape: bf16[64,32], index: 13, kind: input, shape index: {}]
  %s14 = inlined_call_operand.vmem [shape: f32[1,32], index: 14, kind: input, shape index: {}]
  %s15 = inlined_call_operand.vmem [shape: f32[2,1,32], index: 15, kind: input, shape index: {}]
  %s16 = inlined_call_operand.vmem [shape: f32[2,1,32], index: 16, kind: input, shape index: {}]
  %s17 = inlined_call_operand.hbm [shape: f32[2,8,32], index: 17, kind: output, shape index: {}]
  %s18 = sld [smem:[#allocation0]]
  $region113: #{tpu_custom_call.1} parent=0
    _
  %s20 = ssub.s32 1, %s18
  %s21 = scalar_select 0, %s20, %s18
  $region1: #{tpu_custom_call.1} parent=0
    #allocation3 [shape = 'u8[4096]{0}', space=vmem, size = 0x1000, scoped, tag = 'input window, operand 1']
    #allocation4 [shape = 's32[2]{0}', space=sflag, size = 0x8, scoped, tag = 'scoped memory for tpu_custom_call.1']
    #allocation5 [shape = 's32[2]{0}', space=sflag, size = 0x8, scoped, tag = 'scoped memory for tpu_custom_call.1']
    #allocation6 [shape = 'u8[2048]{0}', space=vmem, size = 0x800, scoped, tag = 'input window, operand 3, single buffered']
    #allocation7 [shape = 's32[1]{0}', space=sflag, size = 0x4, scoped, tag = 'scoped memory for tpu_custom_call.1']
    #allocation8 [shape = 'u8[2048]{0}', space=vmem, size = 0x800, scoped, tag = 'input window, operand 4, single buffered']
    #allocation9 [shape = 'u8[8192]{0}', space=vmem, size = 0x2000, scoped, tag = 'output window, operand 0']
    %22 = vsyncpa [#allocation4], 0
    %s23 = scalar_lea.sflag [#allocation4], 1
    %24 = vsyncpa %s23, 0
    %25 = vsyncpa [#allocation7], 0
    %26 = vsyncpa [#allocation5], 0
    %s27 = scalar_lea.sflag [#allocation5], 1
    %28 = vsyncpa %s27, 0
    loop: start=0, step=1, limit=4
    $region2: #{tpu_custom_call.1} parent=1 // loop_pre_header
      _
    $region3: #{tpu_custom_call.1} parent=1 // loop_header
      %s30 = sphi 0, %s34
      %p31 = scmp.ge.s32.totalorder %s30, 4
      %s40 = sphi 0, %s42
      %s43 = sphi 0, %s40
      %s44 = sphi 0, %s43
      %s60 = sphi 0, %s44
      %s66 = sphi 0, %s68
      %s69 = sphi 0, %s66
      %s70 = sphi 0, %s69
      %s86 = sphi 0, %s70
      %s90 = sphi 0, %s90
      %s92 = sphi 0, %s90
      %s93 = sphi 0, %s92
      %s107 = sphi 0, %s93
      %s111 = sphi 0, %s111
      %s113 = sphi 0, %s111
      %s114 = sphi 0, %s113
      %s128 = sphi 0, %s114
      %s132 = sphi 0, %s132
      %s134 = sphi 0, %s132
      %s135 = sphi 0, %s134
      %s149 = sphi 0, %s135
      %s153 = sphi 0, %s153
      %s155 = sphi 0, %s153
      %s156 = sphi 0, %s155
      %s170 = sphi 0, %s156
      %s174 = sphi 0, %s174
      %s176 = sphi 0, %s174
      %s177 = sphi 0, %s176
      %s191 = sphi 0, %s177
      %s195 = sphi 0, %s195
      %s197 = sphi 0, %s195
      %s198 = sphi 0, %s197
      %s212 = sphi 0, %s198
      %s216 = sphi 0, %s216
      %s218 = sphi 0, %s216
      %s219 = sphi 0, %s218
      %s233 = sphi 0, %s219
      %s237 = sphi 0, %s237
      %s239 = sphi 0, %s237
      %s240 = sphi 0, %s239
      %s254 = sphi 0, %s240
      %s258 = sphi 0, %s258
      %s260 = sphi 0, %s258
      %s261 = sphi 0, %s260
      %s275 = sphi 0, %s261
      %s279 = sphi 0, %s279
      %s281 = sphi 0, %s279
      %s282 = sphi 0, %s281
      %s296 = sphi 0, %s282
      %s300 = sphi 0, %s300
      %s302 = sphi 0, %s300
      %s303 = sphi 0, %s302
      %s317 = sphi 0, %s303
      %s321 = sphi 0, %s321
      %s323 = sphi 0, %s321
      %s324 = sphi 0, %s323
      %s338 = sphi 0, %s324
      %s342 = sphi 0, %s342
      %s344 = sphi 0, %s342
      %s345 = sphi 0, %s344
      %s359 = sphi 0, %s345
      %s363 = sphi 0, %s363
      %s365 = sphi 0, %s363
      %s366 = sphi 0, %s365
      %s380 = sphi 0, %s366
      %s384 = sphi 0, %s384
      %s386 = sphi 0, %s384
      %s387 = sphi 0, %s386
      %s401 = sphi 0, %s387
      %s407 = sphi 0, %s409
      %s410 = sphi 0, %s407
      %s411 = sphi 0, %s410
      %s427 = sphi 0, %s411
    $region4: #{tpu_custom_call.1} parent=1 // loop_header_branch
      %33 = sbr.rel (%p31) target = $region8
    $region5: #{tpu_custom_call.1} parent=1 // loop_body
      %s35 = ssub.s32 %s30, 1
      %s36 = ssub.s32 %s30, 2
      %s37 = sadd.s32 %s30, 1
      %s38 = ssub.s32 %s30, %s37
      %p39 = scmp.eq.s32.totalorder %s38, 0
      %s41 = sadd.s32 %s40, 1
      %s42 = scalar_select %p39, %s40, %s41
      %p45 = pneg %p39
      %p46 = scmp.eq.s32.totalorder %s30, 1
      %p47 = por %p45, %p46
      %p48 = scmp.ne.s32.totalorder %s40, %s43
      %p49 = scmp.eq.s32.totalorder %s30, 0
      %p50 = por %p48, %p49
      %p51 = scmp.ne.s32.totalorder %s40, %s43
      %p52 = scmp.eq.s32.totalorder %s35, 1
      %p53 = por %p51, %p52
      %p54 = scmp.ne.s32.totalorder %s43, %s44
      %p55 = scmp.eq.s32.totalorder %s35, 0
      %p56 = por %p54, %p55
      %p57 = scmp.ne.s32.totalorder %s43, %s44
      %p58 = scmp.eq.s32.totalorder %s36, 1
      %p59 = por %p57, %p58
      %p61 = scmp.ne.s32.totalorder %s44, %s60
      %p62 = scmp.eq.s32.totalorder %s36, 0
      %p63 = por %p61, %p62
      %s64 = ssub.s32 %s30, %s37
      %p65 = scmp.eq.s32.totalorder %s64, 0
      %s67 = sadd.s32 %s66, 1
      %s68 = scalar_select %p65, %s66, %s67
      %p71 = pneg %p65
      %p72 = scmp.eq.s32.totalorder %s30, 1
      %p73 = por %p71, %p72
      %p74 = scmp.ne.s32.totalorder %s66, %s69
      %p75 = scmp.eq.s32.totalorder %s30, 0
      %p76 = por %p74, %p75
      %p77 = scmp.ne.s32.totalorder %s66, %s69
      %p78 = scmp.eq.s32.totalorder %s35, 1
      %p79 = por %p77, %p78
      %p80 = scmp.ne.s32.totalorder %s69, %s70
      %p81 = scmp.eq.s32.totalorder %s35, 0
      %p82 = por %p80, %p81
      %p83 = scmp.ne.s32.totalorder %s69, %s70
      %p84 = scmp.eq.s32.totalorder %s36, 1
      %p85 = por %p83, %p84
      %p87 = scmp.ne.s32.totalorder %s70, %s86
      %p88 = scmp.eq.s32.totalorder %s36, 0
      %p89 = por %p87, %p88
      %s91 = sadd.s32 %s90, 1
      %p94 = scmp.eq.s32.totalorder %s30, 1
      %p95 = scmp.ne.s32.totalorder %s90, %s92
      %p96 = scmp.eq.s32.totalorder %s30, 0
      %p97 = por %p95, %p96
      %p98 = scmp.ne.s32.totalorder %s90, %s92
      %p99 = scmp.eq.s32.totalorder %s35, 1
      %p100 = por %p98, %p99
      %p101 = scmp.ne.s32.totalorder %s92, %s93
      %p102 = scmp.eq.s32.totalorder %s35, 0
      %p103 = por %p101, %p102
      %p104 = scmp.ne.s32.totalorder %s92, %s93
      %p105 = scmp.eq.s32.totalorder %s36, 1
      %p106 = por %p104, %p105
      %p108 = scmp.ne.s32.totalorder %s93, %s107
      %p109 = scmp.eq.s32.totalorder %s36, 0
      %p110 = por %p108, %p109
      %s112 = sadd.s32 %s111, 1
      %p115 = scmp.eq.s32.totalorder %s30, 1
      %p116 = scmp.ne.s32.totalorder %s111, %s113
      %p117 = scmp.eq.s32.totalorder %s30, 0
      %p118 = por %p116, %p117
      %p119 = scmp.ne.s32.totalorder %s111, %s113
      %p120 = scmp.eq.s32.totalorder %s35, 1
      %p121 = por %p119, %p120
      %p122 = scmp.ne.s32.totalorder %s113, %s114
      %p123 = scmp.eq.s32.totalorder %s35, 0
      %p124 = por %p122, %p123
      %p125 = scmp.ne.s32.totalorder %s113, %s114
      %p126 = scmp.eq.s32.totalorder %s36, 1
      %p127 = por %p125, %p126
      %p129 = scmp.ne.s32.totalorder %s114, %s128
      %p130 = scmp.eq.s32.totalorder %s36, 0
      %p131 = por %p129, %p130
      %s133 = sadd.s32 %s132, 1
      %p136 = scmp.eq.s32.totalorder %s30, 1
      %p137 = scmp.ne.s32.totalorder %s132, %s134
      %p138 = scmp.eq.s32.totalorder %s30, 0
      %p139 = por %p137, %p138
      %p140 = scmp.ne.s32.totalorder %s132, %s134
      %p141 = scmp.eq.s32.totalorder %s35, 1
      %p142 = por %p140, %p141
      %p143 = scmp.ne.s32.totalorder %s134, %s135
      %p144 = scmp.eq.s32.totalorder %s35, 0
      %p145 = por %p143, %p144
      %p146 = scmp.ne.s32.totalorder %s134, %s135
      %p147 = scmp.eq.s32.totalorder %s36, 1
      %p148 = por %p146, %p147
      %p150 = scmp.ne.s32.totalorder %s135, %s149
      %p151 = scmp.eq.s32.totalorder %s36, 0
      %p152 = por %p150, %p151
      %s154 = sadd.s32 %s153, 1
      %p157 = scmp.eq.s32.totalorder %s30, 1
      %p158 = scmp.ne.s32.totalorder %s153, %s155
      %p159 = scmp.eq.s32.totalorder %s30, 0
      %p160 = por %p158, %p159
      %p161 = scmp.ne.s32.totalorder %s153, %s155
      %p162 = scmp.eq.s32.totalorder %s35, 1
      %p163 = por %p161, %p162
      %p164 = scmp.ne.s32.totalorder %s155, %s156
      %p165 = scmp.eq.s32.totalorder %s35, 0
      %p166 = por %p164, %p165
      %p167 = scmp.ne.s32.totalorder %s155, %s156
      %p168 = scmp.eq.s32.totalorder %s36, 1
      %p169 = por %p167, %p168
      %p171 = scmp.ne.s32.totalorder %s156, %s170
      %p172 = scmp.eq.s32.totalorder %s36, 0
      %p173 = por %p171, %p172
      %s175 = sadd.s32 %s174, 1
      %p178 = scmp.eq.s32.totalorder %s30, 1
      %p179 = scmp.ne.s32.totalorder %s174, %s176
      %p180 = scmp.eq.s32.totalorder %s30, 0
      %p181 = por %p179, %p180
      %p182 = scmp.ne.s32.totalorder %s174, %s176
      %p183 = scmp.eq.s32.totalorder %s35, 1
      %p184 = por %p182, %p183
      %p185 = scmp.ne.s32.totalorder %s176, %s177
      %p186 = scmp.eq.s32.totalorder %s35, 0
      %p187 = por %p185, %p186
      %p188 = scmp.ne.s32.totalorder %s176, %s177
      %p189 = scmp.eq.s32.totalorder %s36, 1
      %p190 = por %p188, %p189
      %p192 = scmp.ne.s32.totalorder %s177, %s191
      %p193 = scmp.eq.s32.totalorder %s36, 0
      %p194 = por %p192, %p193
      %s196 = sadd.s32 %s195, 1
      %p199 = scmp.eq.s32.totalorder %s30, 1
      %p200 = scmp.ne.s32.totalorder %s195, %s197
      %p201 = scmp.eq.s32.totalorder %s30, 0
      %p202 = por %p200, %p201
      %p203 = scmp.ne.s32.totalorder %s195, %s197
      %p204 = scmp.eq.s32.totalorder %s35, 1
      %p205 = por %p203, %p204
      %p206 = scmp.ne.s32.totalorder %s197, %s198
      %p207 = scmp.eq.s32.totalorder %s35, 0
      %p208 = por %p206, %p207
      %p209 = scmp.ne.s32.totalorder %s197, %s198
      %p210 = scmp.eq.s32.totalorder %s36, 1
      %p211 = por %p209, %p210
      %p213 = scmp.ne.s32.totalorder %s198, %s212
      %p214 = scmp.eq.s32.totalorder %s36, 0
      %p215 = por %p213, %p214
      %s217 = sadd.s32 %s216, 1
      %p220 = scmp.eq.s32.totalorder %s30, 1
      %p221 = scmp.ne.s32.totalorder %s216, %s218
      %p222 = scmp.eq.s32.totalorder %s30, 0
      %p223 = por %p221, %p222
      %p224 = scmp.ne.s32.totalorder %s216, %s218
      %p225 = scmp.eq.s32.totalorder %s35, 1
      %p226 = por %p224, %p225
      %p227 = scmp.ne.s32.totalorder %s218, %s219
      %p228 = scmp.eq.s32.totalorder %s35, 0
      %p229 = por %p227, %p228
      %p230 = scmp.ne.s32.totalorder %s218, %s219
      %p231 = scmp.eq.s32.totalorder %s36, 1
      %p232 = por %p230, %p231
      %p234 = scmp.ne.s32.totalorder %s219, %s233
      %p235 = scmp.eq.s32.totalorder %s36, 0
      %p236 = por %p234, %p235
      %s238 = sadd.s32 %s237, 1
      %p241 = scmp.eq.s32.totalorder %s30, 1
      %p242 = scmp.ne.s32.totalorder %s237, %s239
      %p243 = scmp.eq.s32.totalorder %s30, 0
      %p244 = por %p242, %p243
      %p245 = scmp.ne.s32.totalorder %s237, %s239
      %p246 = scmp.eq.s32.totalorder %s35, 1
      %p247 = por %p245, %p246
      %p248 = scmp.ne.s32.totalorder %s239, %s240
      %p249 = scmp.eq.s32.totalorder %s35, 0
      %p250 = por %p248, %p249
      %p251 = scmp.ne.s32.totalorder %s239, %s240
      %p252 = scmp.eq.s32.totalorder %s36, 1
      %p253 = por %p251, %p252
      %p255 = scmp.ne.s32.totalorder %s240, %s254
      %p256 = scmp.eq.s32.totalorder %s36, 0
      %p257 = por %p255, %p256
      %s259 = sadd.s32 %s258, 1
      %p262 = scmp.eq.s32.totalorder %s30, 1
      %p263 = scmp.ne.s32.totalorder %s258, %s260
      %p264 = scmp.eq.s32.totalorder %s30, 0
      %p265 = por %p263, %p264
      %p266 = scmp.ne.s32.totalorder %s258, %s260
      %p267 = scmp.eq.s32.totalorder %s35, 1
      %p268 = por %p266, %p267
      %p269 = scmp.ne.s32.totalorder %s260, %s261
      %p270 = scmp.eq.s32.totalorder %s35, 0
      %p271 = por %p269, %p270
      %p272 = scmp.ne.s32.totalorder %s260, %s261
      %p273 = scmp.eq.s32.totalorder %s36, 1
      %p274 = por %p272, %p273
      %p276 = scmp.ne.s32.totalorder %s261, %s275
      %p277 = scmp.eq.s32.totalorder %s36, 0
      %p278 = por %p276, %p277
      %s280 = sadd.s32 %s279, 1
      %p283 = scmp.eq.s32.totalorder %s30, 1
      %p284 = scmp.ne.s32.totalorder %s279, %s281
      %p285 = scmp.eq.s32.totalorder %s30, 0
      %p286 = por %p284, %p285
      %p287 = scmp.ne.s32.totalorder %s279, %s281
      %p288 = scmp.eq.s32.totalorder %s35, 1
      %p289 = por %p287, %p288
      %p290 = scmp.ne.s32.totalorder %s281, %s282
      %p291 = scmp.eq.s32.totalorder %s35, 0
      %p292 = por %p290, %p291
      %p293 = scmp.ne.s32.totalorder %s281, %s282
      %p294 = scmp.eq.s32.totalorder %s36, 1
      %p295 = por %p293, %p294
      %p297 = scmp.ne.s32.totalorder %s282, %s296
      %p298 = scmp.eq.s32.totalorder %s36, 0
      %p299 = por %p297, %p298
      %s301 = sadd.s32 %s300, 1
      %p304 = scmp.eq.s32.totalorder %s30, 1
      %p305 = scmp.ne.s32.totalorder %s300, %s302
      %p306 = scmp.eq.s32.totalorder %s30, 0
      %p307 = por %p305, %p306
      %p308 = scmp.ne.s32.totalorder %s300, %s302
      %p309 = scmp.eq.s32.totalorder %s35, 1
      %p310 = por %p308, %p309
      %p311 = scmp.ne.s32.totalorder %s302, %s303
      %p312 = scmp.eq.s32.totalorder %s35, 0
      %p313 = por %p311, %p312
      %p314 = scmp.ne.s32.totalorder %s302, %s303
      %p315 = scmp.eq.s32.totalorder %s36, 1
      %p316 = por %p314, %p315
      %p318 = scmp.ne.s32.totalorder %s303, %s317
      %p319 = scmp.eq.s32.totalorder %s36, 0
      %p320 = por %p318, %p319
      %s322 = sadd.s32 %s321, 1
      %p325 = scmp.eq.s32.totalorder %s30, 1
      %p326 = scmp.ne.s32.totalorder %s321, %s323
      %p327 = scmp.eq.s32.totalorder %s30, 0
      %p328 = por %p326, %p327
      %p329 = scmp.ne.s32.totalorder %s321, %s323
      %p330 = scmp.eq.s32.totalorder %s35, 1
      %p331 = por %p329, %p330
      %p332 = scmp.ne.s32.totalorder %s323, %s324
      %p333 = scmp.eq.s32.totalorder %s35, 0
      %p334 = por %p332, %p333
      %p335 = scmp.ne.s32.totalorder %s323, %s324
      %p336 = scmp.eq.s32.totalorder %s36, 1
      %p337 = por %p335, %p336
      %p339 = scmp.ne.s32.totalorder %s324, %s338
      %p340 = scmp.eq.s32.totalorder %s36, 0
      %p341 = por %p339, %p340
      %s343 = sadd.s32 %s342, 1
      %p346 = scmp.eq.s32.totalorder %s30, 1
      %p347 = scmp.ne.s32.totalorder %s342, %s344
      %p348 = scmp.eq.s32.totalorder %s30, 0
      %p349 = por %p347, %p348
      %p350 = scmp.ne.s32.totalorder %s342, %s344
      %p351 = scmp.eq.s32.totalorder %s35, 1
      %p352 = por %p350, %p351
      %p353 = scmp.ne.s32.totalorder %s344, %s345
      %p354 = scmp.eq.s32.totalorder %s35, 0
      %p355 = por %p353, %p354
      %p356 = scmp.ne.s32.totalorder %s344, %s345
      %p357 = scmp.eq.s32.totalorder %s36, 1
      %p358 = por %p356, %p357
      %p360 = scmp.ne.s32.totalorder %s345, %s359
      %p361 = scmp.eq.s32.totalorder %s36, 0
      %p362 = por %p360, %p361
      %s364 = sadd.s32 %s363, 1
      %p367 = scmp.eq.s32.totalorder %s30, 1
      %p368 = scmp.ne.s32.totalorder %s363, %s365
      %p369 = scmp.eq.s32.totalorder %s30, 0
      %p370 = por %p368, %p369
      %p371 = scmp.ne.s32.totalorder %s363, %s365
      %p372 = scmp.eq.s32.totalorder %s35, 1
      %p373 = por %p371, %p372
      %p374 = scmp.ne.s32.totalorder %s365, %s366
      %p375 = scmp.eq.s32.totalorder %s35, 0
      %p376 = por %p374, %p375
      %p377 = scmp.ne.s32.totalorder %s365, %s366
      %p378 = scmp.eq.s32.totalorder %s36, 1
      %p379 = por %p377, %p378
      %p381 = scmp.ne.s32.totalorder %s366, %s380
      %p382 = scmp.eq.s32.totalorder %s36, 0
      %p383 = por %p381, %p382
      %s385 = sadd.s32 %s384, 1
      %p388 = scmp.eq.s32.totalorder %s30, 1
      %p389 = scmp.ne.s32.totalorder %s384, %s386
      %p390 = scmp.eq.s32.totalorder %s30, 0
      %p391 = por %p389, %p390
      %p392 = scmp.ne.s32.totalorder %s384, %s386
      %p393 = scmp.eq.s32.totalorder %s35, 1
      %p394 = por %p392, %p393
      %p395 = scmp.ne.s32.totalorder %s386, %s387
      %p396 = scmp.eq.s32.totalorder %s35, 0
      %p397 = por %p395, %p396
      %p398 = scmp.ne.s32.totalorder %s386, %s387
      %p399 = scmp.eq.s32.totalorder %s36, 1
      %p400 = por %p398, %p399
      %p402 = scmp.ne.s32.totalorder %s387, %s401
      %p403 = scmp.eq.s32.totalorder %s36, 0
      %p404 = por %p402, %p403
      %s405 = ssub.s32 %s30, %s37
      %p406 = scmp.eq.s32.totalorder %s405, 0
      %s408 = sadd.s32 %s407, 1
      %s409 = scalar_select %p406, %s407, %s408
      %p412 = pneg %p406
      %p413 = scmp.eq.s32.totalorder %s30, 1
      %p414 = por %p412, %p413
      %p415 = scmp.ne.s32.totalorder %s407, %s410
      %p416 = scmp.eq.s32.totalorder %s30, 0
      %p417 = por %p415, %p416
      %p418 = scmp.ne.s32.totalorder %s407, %s410
      %p419 = scmp.eq.s32.totalorder %s35, 1
      %p420 = por %p418, %p419
      %p421 = scmp.ne.s32.totalorder %s410, %s411
      %p422 = scmp.eq.s32.totalorder %s35, 0
      %p423 = por %p421, %p422
      %p424 = scmp.ne.s32.totalorder %s410, %s411
      %p425 = scmp.eq.s32.totalorder %s36, 1
      %p426 = por %p424, %p425
      %p428 = scmp.ne.s32.totalorder %s411, %s427
      %p429 = scmp.eq.s32.totalorder %s36, 0
      %p430 = por %p428, %p429
      %p431 = scmp.le.s32.totalorder 1, %s30
      %p432 = scmp.lt.s32.totalorder %s30, 3
      %p433 = pnand %p431, %p432
      %p434 = pneg %p433
      // Predicated region
      $region9: #{tpu_custom_call.1} parent=5 // pred_check
        _
      $region10: #{tpu_custom_call.1} parent=5 // pred_check_branch
        %436 = sbr.rel (%p433) target = $region12
      $region11: #{tpu_custom_call.1} parent=5 // pred_region
        %s437 = ssub.s32 %s30, 1
        // Predicated region
        $region13: #{tpu_custom_call.1} parent=11 // pred_check
          %p438 = pneg %p103
        $region14: #{tpu_custom_call.1} parent=11 // pred_check_branch
          %440 = sbr.rel (%p438) target = $region16
        $region15: #{tpu_custom_call.1} parent=11 // pred_region
          _
        $region16: #{tpu_custom_call.1} parent=11 // pred_fallthru
          _
        // Predicated region
        $region17: #{tpu_custom_call.1} parent=11 // pred_check
          %p441 = pneg %p124
        $region18: #{tpu_custom_call.1} parent=11 // pred_check_branch
          %443 = sbr.rel (%p441) target = $region20
        $region19: #{tpu_custom_call.1} parent=11 // pred_region
          %445 = vsyncadd [#allocation7], 0
          %s446 = sshll.u32 %s3, 4
          %s447 = int_to_ptr.hbm [resolvable:$true] %s446
          %s448 = sshll.u32 [#allocation6], 4
          %s449 = int_to_ptr.vmem [resolvable:$true] %s448
          %454 = dma.hbm_to_vmem [thread:$0]  %s447, 64, %s449, [#allocation7], 16, 16, 1
        $region20: #{tpu_custom_call.1} parent=11 // pred_fallthru
          _
        // Predicated region
        $region21: #{tpu_custom_call.1} parent=11 // pred_check
          %p455 = pneg %p145
        $region22: #{tpu_custom_call.1} parent=11 // pred_check_branch
          %457 = sbr.rel (%p455) target = $region24
        $region23: #{tpu_custom_call.1} parent=11 // pred_region
          %459 = vsyncadd [#allocation7], 0
          %s460 = sshll.u32 %s4, 4
          %s461 = int_to_ptr.hbm [resolvable:$true] %s460
          %s462 = sshll.u32 [#allocation8], 4
          %s463 = int_to_ptr.vmem [resolvable:$true] %s462
          %468 = dma.hbm_to_vmem [thread:$0]  %s461, 64, %s463, [#allocation7], 16, 16, 1
        $region24: #{tpu_custom_call.1} parent=11 // pred_fallthru
          _
        // Predicated region
        $region25: #{tpu_custom_call.1} parent=11 // pred_check
          %p469 = pneg %p166
        $region26: #{tpu_custom_call.1} parent=11 // pred_check_branch
          %471 = sbr.rel (%p469) target = $region28
        $region27: #{tpu_custom_call.1} parent=11 // pred_region
          _
        $region28: #{tpu_custom_call.1} parent=11 // pred_fallthru
          _
        // Predicated region
        $region29: #{tpu_custom_call.1} parent=11 // pred_check
          %p472 = pneg %p187
        $region30: #{tpu_custom_call.1} parent=11 // pred_check_branch
          %474 = sbr.rel (%p472) target = $region32
        $region31: #{tpu_custom_call.1} parent=11 // pred_region
          _
        $region32: #{tpu_custom_call.1} parent=11 // pred_fallthru
          _
        // Predicated region
        $region33: #{tpu_custom_call.1} parent=11 // pred_check
          %p475 = pneg %p208
        $region34: #{tpu_custom_call.1} parent=11 // pred_check_branch
          %477 = sbr.rel (%p475) target = $region36
        $region35: #{tpu_custom_call.1} parent=11 // pred_region
          _
        $region36: #{tpu_custom_call.1} parent=11 // pred_fallthru
          _
        // Predicated region
        $region37: #{tpu_custom_call.1} parent=11 // pred_check
          %p478 = pneg %p229
        $region38: #{tpu_custom_call.1} parent=11 // pred_check_branch
          %480 = sbr.rel (%p478) target = $region40
        $region39: #{tpu_custom_call.1} parent=11 // pred_region
          _
        $region40: #{tpu_custom_call.1} parent=11 // pred_fallthru
          _
        // Predicated region
        $region41: #{tpu_custom_call.1} parent=11 // pred_check
          %p481 = pneg %p250
        $region42: #{tpu_custom_call.1} parent=11 // pred_check_branch
          %483 = sbr.rel (%p481) target = $region44
        $region43: #{tpu_custom_call.1} parent=11 // pred_region
          _
        $region44: #{tpu_custom_call.1} parent=11 // pred_fallthru
          _
        // Predicated region
        $region45: #{tpu_custom_call.1} parent=11 // pred_check
          %p484 = pneg %p271
        $region46: #{tpu_custom_call.1} parent=11 // pred_check_branch
          %486 = sbr.rel (%p484) target = $region48
        $region47: #{tpu_custom_call.1} parent=11 // pred_region
          _
        $region48: #{tpu_custom_call.1} parent=11 // pred_fallthru
          _
        // Predicated region
        $region49: #{tpu_custom_call.1} parent=11 // pred_check
          %p487 = pneg %p292
        $region50: #{tpu_custom_call.1} parent=11 // pred_check_branch
          %489 = sbr.rel (%p487) target = $region52
        $region51: #{tpu_custom_call.1} parent=11 // pred_region
          _
        $region52: #{tpu_custom_call.1} parent=11 // pred_fallthru
          _
        // Predicated region
        $region53: #{tpu_custom_call.1} parent=11 // pred_check
          %p490 = pneg %p313
        $region54: #{tpu_custom_call.1} parent=11 // pred_check_branch
          %492 = sbr.rel (%p490) target = $region56
        $region55: #{tpu_custom_call.1} parent=11 // pred_region
          _
        $region56: #{tpu_custom_call.1} parent=11 // pred_fallthru
          _
        // Predicated region
        $region57: #{tpu_custom_call.1} parent=11 // pred_check
          %p493 = pneg %p334
        $region58: #{tpu_custom_call.1} parent=11 // pred_check_branch
          %495 = sbr.rel (%p493) target = $region60
        $region59: #{tpu_custom_call.1} parent=11 // pred_region
          _
        $region60: #{tpu_custom_call.1} parent=11 // pred_fallthru
          _
        // Predicated region
        $region61: #{tpu_custom_call.1} parent=11 // pred_check
          %p496 = pneg %p355
        $region62: #{tpu_custom_call.1} parent=11 // pred_check_branch
          %498 = sbr.rel (%p496) target = $region64
        $region63: #{tpu_custom_call.1} parent=11 // pred_region
          _
        $region64: #{tpu_custom_call.1} parent=11 // pred_fallthru
          _
        // Predicated region
        $region65: #{tpu_custom_call.1} parent=11 // pred_check
          %p499 = pneg %p376
        $region66: #{tpu_custom_call.1} parent=11 // pred_check_branch
          %501 = sbr.rel (%p499) target = $region68
        $region67: #{tpu_custom_call.1} parent=11 // pred_region
          _
        $region68: #{tpu_custom_call.1} parent=11 // pred_fallthru
          _
        // Predicated region
        $region69: #{tpu_custom_call.1} parent=11 // pred_check
          %p502 = pneg %p397
        $region70: #{tpu_custom_call.1} parent=11 // pred_check_branch
          %504 = sbr.rel (%p502) target = $region72
        $region71: #{tpu_custom_call.1} parent=11 // pred_region
          _
        $region72: #{tpu_custom_call.1} parent=11 // pred_fallthru
          _
      $region12: #{tpu_custom_call.1} parent=5 // pred_fallthru
        _
      %p505 = scmp.lt.s32.totalorder %s30, 2
      // Predicated region
      $region73: #{tpu_custom_call.1} parent=5 // pred_check
        %p506 = pneg %p505
      $region74: #{tpu_custom_call.1} parent=5 // pred_check_branch
        %508 = sbr.rel (%p506) target = $region76
      $region75: #{tpu_custom_call.1} parent=5 // pred_region
        // Predicated region
        $region77: #{tpu_custom_call.1} parent=75 // pred_check
          %p509 = pneg %p50
        $region78: #{tpu_custom_call.1} parent=75 // pred_check_branch
          %511 = sbr.rel (%p509) target = $region80
        $region79: #{tpu_custom_call.1} parent=75 // pred_region
          %p512 = scmp.lt.s32.totalorder %s30, 1
          %s513 = scalar_select %p512, %s30, 1
          %s514 = smul.addr %s513, 8
          %s515 = scalar_lea.vmem %s0, %s514
        $region80: #{tpu_custom_call.1} parent=75 // pred_fallthru
          _
        // Predicated region
        $region81: #{tpu_custom_call.1} parent=75 // pred_check
          %p516 = pneg %p76
        $region82: #{tpu_custom_call.1} parent=75 // pred_check_branch
          %518 = sbr.rel (%p516) target = $region84
        $region83: #{tpu_custom_call.1} parent=75 // pred_region
          %s519 = sand.u32 %s66, 1
          %s520 = scalar_lea.sflag [#allocation4], %s519
          %s521 = sand.u32 %s66, 1
          %s522 = smul.addr %s521, 4
          %s523 = scalar_lea.vmem [#allocation3], %s522
          %525 = vsyncadd %s520, 0
          %s526 = smul.addr %s30, 4
          %s527 = scalar_lea.hbm %s1, %s526
          %s529 = sshll.u32 %s527, 4
          %s530 = int_to_ptr.hbm [resolvable:$true] %s529
          %s531 = sshll.u32 %s523, 4
          %s532 = int_to_ptr.vmem [resolvable:$true] %s531
          %534 = dma.hbm_to_vmem [thread:$0]  %s530, 64, %s532, %s520
        $region84: #{tpu_custom_call.1} parent=75 // pred_fallthru
          _
      $region76: #{tpu_custom_call.1} parent=5 // pred_fallthru
        _
      %p535 = scmp.le.s32.totalorder 1, %s30
      %p536 = scmp.lt.s32.totalorder %s30, 3
      %p537 = pnand %p535, %p536
      %p538 = pneg %p537
      // Predicated region
      $region85: #{tpu_custom_call.1} parent=5 // pred_check
        _
      $region86: #{tpu_custom_call.1} parent=5 // pred_check_branch
        %540 = sbr.rel (%p537) target = $region88
      $region87: #{tpu_custom_call.1} parent=5 // pred_region
        %s541 = ssub.s32 %s30, 1
        %s542 = sand.u32 %s69, 1
        %s543 = scalar_lea.sflag [#allocation4], %s542
        %s544 = sand.u32 %s69, 1
        %s545 = smul.addr %s544, 4
        %s546 = scalar_lea.vmem [#allocation3], %s545
        // Predicated region
        $region89: #{tpu_custom_call.1} parent=87 // pred_check
          %p547 = pneg %p82
        $region90: #{tpu_custom_call.1} parent=87 // pred_check_branch
          %549 = sbr.rel (%p547) target = $region92
        $region91: #{tpu_custom_call.1} parent=87 // pred_region
          %551 = dma.done %s543, 64
        $region92: #{tpu_custom_call.1} parent=87 // pred_fallthru
          _
        // Predicated region
        $region93: #{tpu_custom_call.1} parent=87 // pred_check
          %p552 = pneg %p124
        $region94: #{tpu_custom_call.1} parent=87 // pred_check_branch
          %554 = sbr.rel (%p552) target = $region96
        $region95: #{tpu_custom_call.1} parent=87 // pred_region
          %556 = dma.done [#allocation7], 64
        $region96: #{tpu_custom_call.1} parent=87 // pred_fallthru
          _
        // Predicated region
        $region97: #{tpu_custom_call.1} parent=87 // pred_check
          %p557 = pneg %p145
        $region98: #{tpu_custom_call.1} parent=87 // pred_check_branch
          %559 = sbr.rel (%p557) target = $region100
        $region99: #{tpu_custom_call.1} parent=87 // pred_region
          %561 = dma.done [#allocation7], 64
        $region100: #{tpu_custom_call.1} parent=87 // pred_fallthru
          _
        %p562 = scmp.lt.s32.totalorder %s35, 1
        %s563 = scalar_select %p562, %s35, 1
        %s564 = smul.addr %s563, 8
        %s565 = scalar_lea.vmem %s0, %s564
        %p566 = pneg %p56
        %p567 = pneg %p53
        %s568 = sand.u32 %s69, 1
        %s569 = scalar_lea.sflag [#allocation4], %s568
        %s570 = sand.u32 %s69, 1
        %s571 = smul.addr %s570, 4
        %s572 = scalar_lea.vmem [#allocation3], %s571
        %p573 = pneg %p82
        %p574 = pneg %p79
        %p575 = pneg %p103
        %p576 = pneg %p100
        %p577 = pneg %p124
        %p578 = pneg %p121
        %p579 = pneg %p145
        %p580 = pneg %p142
        %p581 = pneg %p166
        %p582 = pneg %p163
        %p583 = pneg %p187
        %p584 = pneg %p184
        %p585 = pneg %p208
        %p586 = pneg %p205
        %p587 = pneg %p229
        %p588 = pneg %p226
        %p589 = pneg %p250
        %p590 = pneg %p247
        %p591 = pneg %p271
        %p592 = pneg %p268
        %p593 = pneg %p292
        %p594 = pneg %p289
        %p595 = pneg %p313
        %p596 = pneg %p310
        %p597 = pneg %p334
        %p598 = pneg %p331
        %p599 = pneg %p355
        %p600 = pneg %p352
        %p601 = pneg %p376
        %p602 = pneg %p373
        %p603 = pneg %p397
        %p604 = pneg %p394
        %p605 = pneg %p423
        %p606 = pneg %p420
        %s607 = sand.u32 %s410, 1
        %s608 = scalar_lea.sflag [#allocation5], %s607
        %s609 = sand.u32 %s410, 1
        %s610 = smul.addr %s609, 8
        %s611 = scalar_lea.vmem [#allocation9], %s610
        %p612 = scmp.lt.s32.totalorder %s35, 1
        %s613 = scalar_select %p612, %s35, 1
        %s614 = smul.addr %s613, 8
        %s615 = scalar_lea.vmem %s0, %s614
        %v617 = vld [vmem:[%s615] sm:$0xff]
        %v618 = vld [vmem:[%s546] sm:$0xf]
        %v619 = vpack.c.bf16 %v617, %v617
        %v620 = vpack.c.bf16 %v618, %v618
        %v621 = vld [vmem:[%s5] sm:$0xf]
        %v622 = vld [vmem:[%s5 + $0x4] sm:$0xf]
        %v623 = vld [vmem:[%s5 + $0x8] sm:$0xf]
        %v624 = vld [vmem:[%s5 + $0xc] sm:$0xf]
        %v625 = vld [vmem:[%s6] sm:$0x1]
        %v627 = vperm.slane %v625, 0
        %v633 = vunpack.c.l.b16 %v621
        %v634 = vunpack.c.l.b16 %v622
        %v635 = vunpack.c.l.b16 %v623
        %v636 = vunpack.c.l.b16 %v624
        %v637 = vpack.c.b16 %v634, %v633
        %v638 = vpack.c.b16 %v636, %v635
        %vm641 = vcmask 261120
        %v643 = vsel %vm641, %v619, 0
        %645 = vmatpush.bf16.msra.mxu0 0
        %646 = vmatpush.bf16.msra.mxu0 0
        %647 = vmatpush.bf16.msra.mxu0 0
        %648 = vmatpush.bf16.msra.mxu0 0
        %649 = vmatpush.bf16.msra.mxu0 0
        %650 = vmatpush.bf16.msra.mxu0 0
        %651 = vmatpush.bf16.msra.mxu0 %v638
        %652 = vmatpush.bf16.msra.mxu0 %v637
        %653 = vmatmul.bf16.gmra.mxu0 %v643
        %v654 = vpop.f32.mrf.mxu0
        %v655 = vadd.f32 %v627, %v654
        %v656 = vpop.f32.mrf.mxu0
        %657 = vdwg.mxu0
        %659 = vrot.lane.b32.xlu0 %v655, 120
        %v660 = vpop.permute.xlu0 %659
        %662 = vrot.lane.b32.xlu0 %v655, 112
        %v663 = vpop.permute.xlu0 %662
        %665 = vrot.lane.b32.xlu0 %v655, 104
        %v666 = vpop.permute.xlu0 %665
        %v668 = vld [vmem:[#allocation6] sm:$0x1]
        %v669 = vld [vmem:[#allocation6 + $0x1] sm:$0x1]
        %v670 = vld [vmem:[#allocation6 + $0x2] sm:$0x1]
        %v671 = vld [vmem:[#allocation6 + $0x3] sm:$0x1]
        %v676 = vperm.slane %v668, 0
        %v677 = vperm.slane %v669, 0
        %v678 = vperm.slane %v670, 0
        %v679 = vperm.slane %v671, 0
        %v684 = vadd.f32 %v655, %v676
        %v685 = vadd.f32 %v660, %v677
        %v686 = vadd.f32 %v663, %v678
        %v687 = vadd.f32 %v666, %v679
        %v688 = vpack.c.bf16 %v684, %v684
        %v689 = vpack.c.bf16 %v685, %v685
        %v690 = vpack.c.bf16 %v686, %v686
        %v691 = vpack.c.bf16 %v687, %v687
        %v692 = vld [vmem:[#allocation8] sm:$0x1]
        %v693 = vld [vmem:[#allocation8 + $0x1] sm:$0x1]
        %v694 = vld [vmem:[#allocation8 + $0x2] sm:$0x1]
        %v695 = vld [vmem:[#allocation8 + $0x3] sm:$0x1]
        %v700 = vperm.slane %v692, 0
        %v701 = vperm.slane %v693, 0
        %v702 = vperm.slane %v694, 0
        %v703 = vperm.slane %v695, 0
        %v708 = vadd.f32 %v655, %v700
        %v709 = vadd.f32 %v660, %v701
        %v710 = vadd.f32 %v663, %v702
        %v711 = vadd.f32 %v666, %v703
        %v712 = vpack.c.bf16 %v708, %v708
        %v713 = vpack.c.bf16 %v709, %v709
        %v714 = vpack.c.bf16 %v710, %v710
        %v715 = vpack.c.bf16 %v711, %v711
        %v716 = vld [vmem:[%s7] sm:$0xf]
        %v717 = vld [vmem:[%s7 + $0x4] sm:$0xf]
        %v718 = vld [vmem:[%s7 + $0x8] sm:$0xf]
        %v719 = vld [vmem:[%s7 + $0xc] sm:$0xf]
        %v720 = vld [vmem:[%s8] sm:$0x1]
        %v722 = vperm.slane %v720, 0
        %v728 = vunpack.c.l.b16 %v716
        %v729 = vunpack.c.l.b16 %v717
        %v730 = vunpack.c.l.b16 %v718
        %v731 = vunpack.c.l.b16 %v719
        %v732 = vpack.c.b16 %v729, %v728
        %v733 = vpack.c.b16 %v731, %v730
        %v737 = vsel %vm641, %v620, 0
        %739 = vmatpush.bf16.msra.mxu0 0
        %740 = vmatpush.bf16.msra.mxu0 0
        %741 = vmatpush.bf16.msra.mxu0 0
        %742 = vmatpush.bf16.msra.mxu0 0
        %743 = vmatpush.bf16.msra.mxu0 0
        %744 = vmatpush.bf16.msra.mxu0 0
        %745 = vmatpush.bf16.msra.mxu0 %v733
        %746 = vmatpush.bf16.msra.mxu0 %v732
        %747 = vmatmul.bf16.gmra.mxu0 %v737
        %v748 = vpop.f32.mrf.mxu0
        %v749 = vadd.f32 %v722, %v748
        %v750 = vpop.f32.mrf.mxu0
        %751 = vdwg.mxu0
        %752 = vmatpush.bf16.msra.mxu0 0
        %753 = vmatpush.bf16.msra.mxu0 0
        %754 = vmatpush.bf16.msra.mxu0 0
        %755 = vmatpush.bf16.msra.mxu0 0
        %756 = vmatpush.bf16.msra.mxu0 0
        %757 = vmatpush.bf16.msra.mxu0 0
        %758 = vmatpush.bf16.msra.mxu0 %v733
        %759 = vmatpush.bf16.msra.mxu0 %v732
        %760 = vmatmul.bf16.gmra.mxu0 %v643
        %v761 = vpop.f32.mrf.mxu0
        %v762 = vadd.f32 %v722, %v761
        %v763 = vpop.f32.mrf.mxu0
        %764 = vdwg.mxu0
        %766 = vrot.lane.b32.xlu0 %v749, 120
        %v767 = vpop.permute.xlu0 %766
        %769 = vrot.lane.b32.xlu0 %v749, 112
        %v770 = vpop.permute.xlu0 %769
        %772 = vrot.lane.b32.xlu0 %v749, 104
        %v773 = vpop.permute.xlu0 %772
        %v775 = vpack.c.bf16 %v749, %v749
        %v776 = vpack.c.bf16 %v767, %v767
        %v777 = vpack.c.bf16 %v770, %v770
        %v778 = vpack.c.bf16 %v773, %v773
        %780 = vrot.lane.b32.xlu0 %v762, 120
        %v781 = vpop.permute.xlu0 %780
        %783 = vrot.lane.b32.xlu0 %v762, 112
        %v784 = vpop.permute.xlu0 %783
        %786 = vrot.lane.b32.xlu0 %v762, 104
        %v787 = vpop.permute.xlu0 %786
        %v789 = vpack.c.bf16 %v762, %v762
        %v790 = vpack.c.bf16 %v781, %v781
        %v791 = vpack.c.bf16 %v784, %v784
        %v792 = vpack.c.bf16 %v787, %v787
        %vm793 = vcmask 64512
        %v795 = vsel %vm793, %v688, 0
        %v798 = vsel %vm793, %v775, 0
        %800 = vmatpush.bf16.xpose.msra.mxu0 0
        %801 = vmatpush.bf16.xpose.msra.mxu0 0
        %802 = vmatpush.bf16.xpose.msra.mxu0 0
        %803 = vmatpush.bf16.xpose.msra.mxu0 0
        %804 = vmatpush.bf16.xpose.msra.mxu0 0
        %805 = vmatpush.bf16.xpose.msra.mxu0 0
        %806 = vmatpush.bf16.xpose.msra.mxu0 0
        %807 = vmatpush.bf16.xpose.msra.mxu0 %v798
        %808 = vmatmul.bf16.gmra.mxu0 %v795
        %v809 = vpop.f32.mrf.mxu0
        %v810 = vadd.f32 0.0, %v809
        %v811 = vpop.f32.mrf.mxu0
        %812 = vdwg.mxu0
        %v814 = vsel %vm793, %v689, 0
        %v817 = vsel %vm793, %v776, 0
        %819 = vmatpush.bf16.xpose.msra.mxu0 0
        %820 = vmatpush.bf16.xpose.msra.mxu0 0
        %821 = vmatpush.bf16.xpose.msra.mxu0 0
        %822 = vmatpush.bf16.xpose.msra.mxu0 0
        %823 = vmatpush.bf16.xpose.msra.mxu0 0
        %824 = vmatpush.bf16.xpose.msra.mxu0 0
        %825 = vmatpush.bf16.xpose.msra.mxu0 0
        %826 = vmatpush.bf16.xpose.msra.mxu0 %v817
        %827 = vmatmul.bf16.gmra.mxu0 %v814
        %v828 = vpop.f32.mrf.mxu0
        %v829 = vadd.f32 0.0, %v828
        %v830 = vpop.f32.mrf.mxu0
        %831 = vdwg.mxu0
        %v833 = vsel %vm793, %v690, 0
        %v836 = vsel %vm793, %v777, 0
        %838 = vmatpush.bf16.xpose.msra.mxu0 0
        %839 = vmatpush.bf16.xpose.msra.mxu0 0
        %840 = vmatpush.bf16.xpose.msra.mxu0 0
        %841 = vmatpush.bf16.xpose.msra.mxu0 0
        %842 = vmatpush.bf16.xpose.msra.mxu0 0
        %843 = vmatpush.bf16.xpose.msra.mxu0 0
        %844 = vmatpush.bf16.xpose.msra.mxu0 0
        %845 = vmatpush.bf16.xpose.msra.mxu0 %v836
        %846 = vmatmul.bf16.gmra.mxu0 %v833
        %v847 = vpop.f32.mrf.mxu0
        %v848 = vadd.f32 0.0, %v847
        %v849 = vpop.f32.mrf.mxu0
        %850 = vdwg.mxu0
        %v852 = vsel %vm793, %v691, 0
        %v855 = vsel %vm793, %v778, 0
        %857 = vmatpush.bf16.xpose.msra.mxu0 0
        %858 = vmatpush.bf16.xpose.msra.mxu0 0
        %859 = vmatpush.bf16.xpose.msra.mxu0 0
        %860 = vmatpush.bf16.xpose.msra.mxu0 0
        %861 = vmatpush.bf16.xpose.msra.mxu0 0
        %862 = vmatpush.bf16.xpose.msra.mxu0 0
        %863 = vmatpush.bf16.xpose.msra.mxu0 0
        %864 = vmatpush.bf16.xpose.msra.mxu0 %v855
        %865 = vmatmul.bf16.gmra.mxu0 %v852
        %v866 = vpop.f32.mrf.mxu0
        %v867 = vadd.f32 0.0, %v866
        %v868 = vpop.f32.mrf.mxu0
        %869 = vdwg.mxu0
        %v871 = vsel %vm793, %v789, 0
        %873 = vmatpush.bf16.xpose.msra.mxu0 0
        %874 = vmatpush.bf16.xpose.msra.mxu0 0
        %875 = vmatpush.bf16.xpose.msra.mxu0 0
        %876 = vmatpush.bf16.xpose.msra.mxu0 0
        %877 = vmatpush.bf16.xpose.msra.mxu0 0
        %878 = vmatpush.bf16.xpose.msra.mxu0 0
        %879 = vmatpush.bf16.xpose.msra.mxu0 0
        %880 = vmatpush.bf16.xpose.msra.mxu0 %v871
        %881 = vmatmul.bf16.gmra.mxu0 %v795
        %v882 = vpop.f32.mrf.mxu0
        %v883 = vadd.f32 0.0, %v882
        %v884 = vpop.f32.mrf.mxu0
        %885 = vdwg.mxu0
        %v887 = vsel %vm793, %v790, 0
        %889 = vmatpush.bf16.xpose.msra.mxu0 0
        %890 = vmatpush.bf16.xpose.msra.mxu0 0
        %891 = vmatpush.bf16.xpose.msra.mxu0 0
        %892 = vmatpush.bf16.xpose.msra.mxu0 0
        %893 = vmatpush.bf16.xpose.msra.mxu0 0
        %894 = vmatpush.bf16.xpose.msra.mxu0 0
        %895 = vmatpush.bf16.xpose.msra.mxu0 0
        %896 = vmatpush.bf16.xpose.msra.mxu0 %v887
        %897 = vmatmul.bf16.gmra.mxu0 %v814
        %v898 = vpop.f32.mrf.mxu0
        %v899 = vadd.f32 0.0, %v898
        %v900 = vpop.f32.mrf.mxu0
        %901 = vdwg.mxu0
        %v903 = vsel %vm793, %v791, 0
        %905 = vmatpush.bf16.xpose.msra.mxu0 0
        %906 = vmatpush.bf16.xpose.msra.mxu0 0
        %907 = vmatpush.bf16.xpose.msra.mxu0 0
        %908 = vmatpush.bf16.xpose.msra.mxu0 0
        %909 = vmatpush.bf16.xpose.msra.mxu0 0
        %910 = vmatpush.bf16.xpose.msra.mxu0 0
        %911 = vmatpush.bf16.xpose.msra.mxu0 0
        %912 = vmatpush.bf16.xpose.msra.mxu0 %v903
        %913 = vmatmul.bf16.gmra.mxu0 %v833
        %v914 = vpop.f32.mrf.mxu0
        %v915 = vadd.f32 0.0, %v914
        %v916 = vpop.f32.mrf.mxu0
        %917 = vdwg.mxu0
        %v919 = vsel %vm793, %v792, 0
        %921 = vmatpush.bf16.xpose.msra.mxu0 0
        %922 = vmatpush.bf16.xpose.msra.mxu0 0
        %923 = vmatpush.bf16.xpose.msra.mxu0 0
        %924 = vmatpush.bf16.xpose.msra.mxu0 0
        %925 = vmatpush.bf16.xpose.msra.mxu0 0
        %926 = vmatpush.bf16.xpose.msra.mxu0 0
        %927 = vmatpush.bf16.xpose.msra.mxu0 0
        %928 = vmatpush.bf16.xpose.msra.mxu0 %v919
        %929 = vmatmul.bf16.gmra.mxu0 %v852
        %v930 = vpop.f32.mrf.mxu0
        %v931 = vadd.f32 0.0, %v930
        %v932 = vpop.f32.mrf.mxu0
        %933 = vdwg.mxu0
        %938 = vrot.lane.b32.xlu0 %v883, 4
        %v939 = vpop.permute.xlu0 %938
        %940 = vrot.lane.b32.xlu0 %v899, 4
        %v941 = vpop.permute.xlu0 %940
        %942 = vrot.lane.b32.xlu0 %v915, 4
        %v943 = vpop.permute.xlu0 %942
        %944 = vrot.lane.b32.xlu0 %v931, 4
        %v945 = vpop.permute.xlu0 %944
        %vm950 = vcmask 31744
        %v951 = vsel %vm950, %v810, %v939
        %v952 = vsel %vm950, %v829, %v941
        %v953 = vsel %vm950, %v848, %v943
        %v954 = vsel %vm950, %v867, %v945
        %v955 = vld [vmem:[%s2] sm:$0xf]
        %v956 = vld [vmem:[%s2 + $0x4] sm:$0x3]
        %v957 = vld [vmem:[%s2 + $0x8] sm:$0xf]
        %v958 = vld [vmem:[%s2 + $0xc] sm:$0x3]
        %v959 = vld [vmem:[%s2 + $0x10] sm:$0xf]
        %v960 = vld [vmem:[%s2 + $0x14] sm:$0x3]
        %v961 = vld [vmem:[%s2 + $0x18] sm:$0xf]
        %v962 = vld [vmem:[%s2 + $0x1c] sm:$0x3]
        %v965 = vunpack.c.l.b16 %v955
        %v966 = vunpack.c.l.b16 %v956
        %v967 = vpack.c.b16 %v966, %v965
        %v969 = vsel %vm793, %v712, 0
        %v972 = vsel %vm793, %v967, 0
        %974 = vmatpush.bf16.xpose.msra.mxu0 0
        %975 = vmatpush.bf16.xpose.msra.mxu0 0
        %976 = vmatpush.bf16.xpose.msra.mxu0 0
        %977 = vmatpush.bf16.xpose.msra.mxu0 0
        %978 = vmatpush.bf16.xpose.msra.mxu0 0
        %979 = vmatpush.bf16.xpose.msra.mxu0 0
        %980 = vmatpush.bf16.xpose.msra.mxu0 0
        %981 = vmatpush.bf16.xpose.msra.mxu0 %v972
        %982 = vmatmul.bf16.gmra.mxu0 %v969
        %v983 = vpop.f32.mrf.mxu0
        %v984 = vadd.f32 0.0, %v983
        %v985 = vpop.f32.mrf.mxu0
        %986 = vdwg.mxu0
        %v989 = vunpack.c.l.b16 %v957
        %v990 = vunpack.c.l.b16 %v958
        %v991 = vpack.c.b16 %v990, %v989
        %v993 = vsel %vm793, %v713, 0
        %v996 = vsel %vm793, %v991, 0
        %998 = vmatpush.bf16.xpose.msra.mxu0 0
        %999 = vmatpush.bf16.xpose.msra.mxu0 0
        %1000 = vmatpush.bf16.xpose.msra.mxu0 0
        %1001 = vmatpush.bf16.xpose.msra.mxu0 0
        %1002 = vmatpush.bf16.xpose.msra.mxu0 0
        %1003 = vmatpush.bf16.xpose.msra.mxu0 0
        %1004 = vmatpush.bf16.xpose.msra.mxu0 0
        %1005 = vmatpush.bf16.xpose.msra.mxu0 %v996
        %1006 = vmatmul.bf16.gmra.mxu0 %v993
        %v1007 = vpop.f32.mrf.mxu0
        %v1008 = vadd.f32 0.0, %v1007
        %v1009 = vpop.f32.mrf.mxu0
        %1010 = vdwg.mxu0
        %v1013 = vunpack.c.l.b16 %v959
        %v1014 = vunpack.c.l.b16 %v960
        %v1015 = vpack.c.b16 %v1014, %v1013
        %v1017 = vsel %vm793, %v714, 0
        %v1020 = vsel %vm793, %v1015, 0
        %1022 = vmatpush.bf16.xpose.msra.mxu0 0
        %1023 = vmatpush.bf16.xpose.msra.mxu0 0
        %1024 = vmatpush.bf16.xpose.msra.mxu0 0
        %1025 = vmatpush.bf16.xpose.msra.mxu0 0
        %1026 = vmatpush.bf16.xpose.msra.mxu0 0
        %1027 = vmatpush.bf16.xpose.msra.mxu0 0
        %1028 = vmatpush.bf16.xpose.msra.mxu0 0
        %1029 = vmatpush.bf16.xpose.msra.mxu0 %v1020
        %1030 = vmatmul.bf16.gmra.mxu0 %v1017
        %v1031 = vpop.f32.mrf.mxu0
        %v1032 = vadd.f32 0.0, %v1031
        %v1033 = vpop.f32.mrf.mxu0
        %1034 = vdwg.mxu0
        %v1037 = vunpack.c.l.b16 %v961
        %v1038 = vunpack.c.l.b16 %v962
        %v1039 = vpack.c.b16 %v1038, %v1037
        %v1041 = vsel %vm793, %v715, 0
        %v1044 = vsel %vm793, %v1039, 0
        %1046 = vmatpush.bf16.xpose.msra.mxu0 0
        %1047 = vmatpush.bf16.xpose.msra.mxu0 0
        %1048 = vmatpush.bf16.xpose.msra.mxu0 0
        %1049 = vmatpush.bf16.xpose.msra.mxu0 0
        %1050 = vmatpush.bf16.xpose.msra.mxu0 0
        %1051 = vmatpush.bf16.xpose.msra.mxu0 0
        %1052 = vmatpush.bf16.xpose.msra.mxu0 0
        %1053 = vmatpush.bf16.xpose.msra.mxu0 %v1044
        %1054 = vmatmul.bf16.gmra.mxu0 %v1041
        %v1055 = vpop.f32.mrf.mxu0
        %v1056 = vadd.f32 0.0, %v1055
        %v1057 = vpop.f32.mrf.mxu0
        %1058 = vdwg.mxu0
        %v1059 = vlaneseq
        %v1060 = vshrl.u32 %v1059, 7
        %v1061 = vlaneseq
        %v1062 = vand.u32 %v1061, 127
        %v1063 = vsub.s32 7, %v1060
        %1068 = vrot.lane.b32.xlu0 %v984, 127
        %v1069 = vpop.permute.xlu0 %1068
        %1070 = vrot.lane.b32.xlu0 %v1008, 127
        %v1071 = vpop.permute.xlu0 %1070
        %1072 = vrot.lane.b32.xlu0 %v1032, 127
        %v1073 = vpop.permute.xlu0 %1072
        %1074 = vrot.lane.b32.xlu0 %v1056, 127
        %v1075 = vpop.permute.xlu0 %1074
        %1080 = vrot.lane.b32.xlu0 %v984, 11
        %v1081 = vpop.permute.xlu0 %1080
        %1082 = vrot.lane.b32.xlu0 %v1008, 11
        %v1083 = vpop.permute.xlu0 %1082
        %1084 = vrot.lane.b32.xlu0 %v1032, 11
        %v1085 = vpop.permute.xlu0 %1084
        %1086 = vrot.lane.b32.xlu0 %v1056, 11
        %v1087 = vpop.permute.xlu0 %1086
        %vm1092 = vcmask 89088
        %v1093 = vsel %vm1092, %v1069, %v1081
        %v1094 = vsel %vm1092, %v1071, %v1083
        %v1095 = vsel %vm1092, %v1073, %v1085
        %v1096 = vsel %vm1092, %v1075, %v1087
        %v1097 = vand.u32 %v1063, 1
        %vm1098 = vcmp.ne.s32.totalorder %v1097, 0
        %v1099 = vsel %vm1098, %v1093, %v984
        %v1100 = vsel %vm1098, %v1094, %v1008
        %v1101 = vsel %vm1098, %v1095, %v1032
        %v1102 = vsel %vm1098, %v1096, %v1056
        %1107 = vrot.lane.b32.xlu0 %v1099, 126
        %v1108 = vpop.permute.xlu0 %1107
        %1109 = vrot.lane.b32.xlu0 %v1100, 126
        %v1110 = vpop.permute.xlu0 %1109
        %1111 = vrot.lane.b32.xlu0 %v1101, 126
        %v1112 = vpop.permute.xlu0 %1111
        %1113 = vrot.lane.b32.xlu0 %v1102, 126
        %v1114 = vpop.permute.xlu0 %1113
        %1119 = vrot.lane.b32.xlu0 %v1099, 10
        %v1120 = vpop.permute.xlu0 %1119
        %1121 = vrot.lane.b32.xlu0 %v1100, 10
        %v1122 = vpop.permute.xlu0 %1121
        %1123 = vrot.lane.b32.xlu0 %v1101, 10
        %v1124 = vpop.permute.xlu0 %1123
        %1125 = vrot.lane.b32.xlu0 %v1102, 10
        %v1126 = vpop.permute.xlu0 %1125
        %vm1131 = vcmask 80896
        %v1132 = vsel %vm1131, %v1108, %v1120
        %v1133 = vsel %vm1131, %v1110, %v1122
        %v1134 = vsel %vm1131, %v1112, %v1124
        %v1135 = vsel %vm1131, %v1114, %v1126
        %v1136 = vand.u32 %v1063, 2
        %vm1137 = vcmp.ne.s32.totalorder %v1136, 0
        %v1138 = vsel %vm1137, %v1132, %v1099
        %v1139 = vsel %vm1137, %v1133, %v1100
        %v1140 = vsel %vm1137, %v1134, %v1101
        %v1141 = vsel %vm1137, %v1135, %v1102
        %1146 = vrot.lane.b32.xlu0 %v1138, 124
        %v1147 = vpop.permute.xlu0 %1146
        %1148 = vrot.lane.b32.xlu0 %v1139, 124
        %v1149 = vpop.permute.xlu0 %1148
        %1150 = vrot.lane.b32.xlu0 %v1140, 124
        %v1151 = vpop.permute.xlu0 %1150
        %1152 = vrot.lane.b32.xlu0 %v1141, 124
        %v1153 = vpop.permute.xlu0 %1152
        %1158 = vrot.lane.b32.xlu0 %v1138, 8
        %v1159 = vpop.permute.xlu0 %1158
        %1160 = vrot.lane.b32.xlu0 %v1139, 8
        %v1161 = vpop.permute.xlu0 %1160
        %1162 = vrot.lane.b32.xlu0 %v1140, 8
        %v1163 = vpop.permute.xlu0 %1162
        %1164 = vrot.lane.b32.xlu0 %v1141, 8
        %v1165 = vpop.permute.xlu0 %1164
        %v1170 = vsel %vm793, %v1147, %v1159
        %v1171 = vsel %vm793, %v1149, %v1161
        %v1172 = vsel %vm793, %v1151, %v1163
        %v1173 = vsel %vm793, %v1153, %v1165
        %v1174 = vand.u32 %v1063, 4
        %vm1175 = vcmp.ne.s32.totalorder %v1174, 0
        %v1176 = vsel %vm1175, %v1170, %v1138
        %v1177 = vsel %vm1175, %v1171, %v1139
        %v1178 = vsel %vm1175, %v1172, %v1140
        %v1179 = vsel %vm1175, %v1173, %v1141
        %v1180 = vadd.s32 %v1060, 4
        %vm1181 = vcmp.le.s32.totalorder %v1062, %v1180
        %v1182 = vadd.f32 %v951, %v1176
        %v1183 = vadd.f32 %v952, %v1177
        %v1184 = vadd.f32 %v953, %v1178
        %v1185 = vadd.f32 %v954, %v1179
        %v1186 = vsel %vm1181, %v1182, -1e+09
        %v1187 = vsel %vm1181, %v1183, -1e+09
        %v1188 = vsel %vm1181, %v1184, -1e+09
        %v1189 = vsel %vm1181, %v1185, -1e+09
        %vm1190 = vcmask 97280
        %v1191 = vsel %vm1190, %v1186, -inf
        %1192 = vmax.xlane.f32.xlu0 %v1191
        %v1193 = vpop.xlane.xlu0 %1192
        %v1194 = vsel %vm1190, %v1187, -inf
        %1195 = vmax.xlane.f32.xlu0 %v1194
        %v1196 = vpop.xlane.xlu0 %1195
        %v1197 = vsel %vm1190, %v1188, -inf
        %1198 = vmax.xlane.f32.xlu0 %v1197
        %v1199 = vpop.xlane.xlu0 %1198
        %v1200 = vsel %vm1190, %v1189, -inf
        %1201 = vmax.xlane.f32.xlu0 %v1200
        %v1202 = vpop.xlane.xlu0 %1201
        %v1203 = vsub.f32 %v1186, %v1193
        %v1204 = vsub.f32 %v1187, %v1196
        %v1205 = vsub.f32 %v1188, %v1199
        %v1206 = vsub.f32 %v1189, %v1202
        %v1207 = vmul.f32 %v1203, 1.442695
        %v1208 = vpow.pop %v1207
        %v1209 = vmul.f32 %v1204, 1.442695
        %v1210 = vpow.pop %v1209
        %v1211 = vmul.f32 %v1205, 1.442695
        %v1212 = vpow.pop %v1211
        %v1213 = vmul.f32 %v1206, 1.442695
        %v1214 = vpow.pop %v1213
        %v1215 = vsel %vm1190, %v1208, 0.0
        %1216 = vadd.xlane.f32.xlu0 %v1215
        %v1217 = vpop.xlane.xlu0 %1216
        %v1218 = vsel %vm1190, %v1210, 0.0
        %1219 = vadd.xlane.f32.xlu0 %v1218
        %v1220 = vpop.xlane.xlu0 %1219
        %v1221 = vsel %vm1190, %v1212, 0.0
        %1222 = vadd.xlane.f32.xlu0 %v1221
        %v1223 = vpop.xlane.xlu0 %1222
        %v1224 = vsel %vm1190, %v1214, 0.0
        %1225 = vadd.xlane.f32.xlu0 %v1224
        %v1226 = vpop.xlane.xlu0 %1225
        %v1227 = vrcp.pop %v1217
        %v1228 = vrcp.pop %v1220
        %v1229 = vrcp.pop %v1223
        %v1230 = vrcp.pop %v1226
        %v1231 = vmul.f32 %v1208, %v1227
        %v1232 = vmul.f32 %v1210, %v1228
        %v1233 = vmul.f32 %v1212, %v1229
        %v1234 = vmul.f32 %v1214, %v1230
        %v1235 = vpack.c.bf16 %v1231, %v1231
        %v1236 = vpack.c.bf16 %v1232, %v1232
        %v1237 = vpack.c.bf16 %v1233, %v1233
        %v1238 = vpack.c.bf16 %v1234, %v1234
        %v1240 = vunpack.c.l.b16 %v1235
        %v1241 = vpack.c.b16 %v1240, %v1240
        %1242 = vrot.lane.b32.xlu0 %v1241, 124
        %v1243 = vpop.permute.xlu0 %1242
        %v1245 = vunpack.c.l.b16 %v789
        %v1246 = vpack.c.b16 %v1245, %v1245
        %1247 = vrot.lane.b32.xlu0 %v1246, 96
        %v1248 = vpop.permute.xlu0 %1247
        %v1250 = vsel %vm793, %v1243, 0
        %vm1252 = vcmask 1043456
        %v1254 = vsel %vm1252, %v1248, 0
        %1256 = vmatpush.bf16.msra.mxu0 0
        %1257 = vmatpush.bf16.msra.mxu0 0
        %1258 = vmatpush.bf16.msra.mxu0 0
        %1259 = vmatpush.bf16.msra.mxu0 0
        %1260 = vmatpush.bf16.msra.mxu0 0
        %1261 = vmatpush.bf16.msra.mxu0 0
        %1262 = vmatpush.bf16.msra.mxu0 0
        %1263 = vmatpush.bf16.msra.mxu0 %v1254
        %1264 = vmatmul.bf16.gmra.mxu0 %v1250
        %v1265 = vpop.f32.mrf.mxu0
        %v1266 = vadd.f32 0.0, %v1265
        %v1267 = vpop.f32.mrf.mxu0
        %1268 = vdwg.mxu0
        %v1270 = vunpack.c.l.b16 %v1236
        %v1271 = vpack.c.b16 %v1270, %v1270
        %1272 = vrot.lane.b32.xlu0 %v1271, 124
        %v1273 = vpop.permute.xlu0 %1272
        %v1275 = vunpack.c.l.b16 %v790
        %v1276 = vpack.c.b16 %v1275, %v1275
        %1277 = vrot.lane.b32.xlu0 %v1276, 96
        %v1278 = vpop.permute.xlu0 %1277
        %v1280 = vsel %vm793, %v1273, 0
        %v1283 = vsel %vm1252, %v1278, 0
        %1285 = vmatpush.bf16.msra.mxu0 0
        %1286 = vmatpush.bf16.msra.mxu0 0
        %1287 = vmatpush.bf16.msra.mxu0 0
        %1288 = vmatpush.bf16.msra.mxu0 0
        %1289 = vmatpush.bf16.msra.mxu0 0
        %1290 = vmatpush.bf16.msra.mxu0 0
        %1291 = vmatpush.bf16.msra.mxu0 0
        %1292 = vmatpush.bf16.msra.mxu0 %v1283
        %1293 = vmatmul.bf16.gmra.mxu0 %v1280
        %v1294 = vpop.f32.mrf.mxu0
        %v1295 = vadd.f32 0.0, %v1294
        %v1296 = vpop.f32.mrf.mxu0
        %1297 = vdwg.mxu0
        %v1299 = vunpack.c.l.b16 %v1237
        %v1300 = vpack.c.b16 %v1299, %v1299
        %1301 = vrot.lane.b32.xlu0 %v1300, 124
        %v1302 = vpop.permute.xlu0 %1301
        %v1304 = vunpack.c.l.b16 %v791
        %v1305 = vpack.c.b16 %v1304, %v1304
        %1306 = vrot.lane.b32.xlu0 %v1305, 96
        %v1307 = vpop.permute.xlu0 %1306
        %v1309 = vsel %vm793, %v1302, 0
        %v1312 = vsel %vm1252, %v1307, 0
        %1314 = vmatpush.bf16.msra.mxu0 0
        %1315 = vmatpush.bf16.msra.mxu0 0
        %1316 = vmatpush.bf16.msra.mxu0 0
        %1317 = vmatpush.bf16.msra.mxu0 0
        %1318 = vmatpush.bf16.msra.mxu0 0
        %1319 = vmatpush.bf16.msra.mxu0 0
        %1320 = vmatpush.bf16.msra.mxu0 0
        %1321 = vmatpush.bf16.msra.mxu0 %v1312
        %1322 = vmatmul.bf16.gmra.mxu0 %v1309
        %v1323 = vpop.f32.mrf.mxu0
        %v1324 = vadd.f32 0.0, %v1323
        %v1325 = vpop.f32.mrf.mxu0
        %1326 = vdwg.mxu0
        %v1328 = vunpack.c.l.b16 %v1238
        %v1329 = vpack.c.b16 %v1328, %v1328
        %1330 = vrot.lane.b32.xlu0 %v1329, 124
        %v1331 = vpop.permute.xlu0 %1330
        %v1333 = vunpack.c.l.b16 %v792
        %v1334 = vpack.c.b16 %v1333, %v1333
        %1335 = vrot.lane.b32.xlu0 %v1334, 96
        %v1336 = vpop.permute.xlu0 %1335
        %v1338 = vsel %vm793, %v1331, 0
        %v1341 = vsel %vm1252, %v1336, 0
        %1343 = vmatpush.bf16.msra.mxu0 0
        %1344 = vmatpush.bf16.msra.mxu0 0
        %1345 = vmatpush.bf16.msra.mxu0 0
        %1346 = vmatpush.bf16.msra.mxu0 0
        %1347 = vmatpush.bf16.msra.mxu0 0
        %1348 = vmatpush.bf16.msra.mxu0 0
        %1349 = vmatpush.bf16.msra.mxu0 0
        %1350 = vmatpush.bf16.msra.mxu0 %v1341
        %1351 = vmatmul.bf16.gmra.mxu0 %v1338
        %v1352 = vpop.f32.mrf.mxu0
        %v1353 = vadd.f32 0.0, %v1352
        %v1354 = vpop.f32.mrf.mxu0
        %1355 = vdwg.mxu0
        %v1357 = vunpack.c.l.b16 %v775
        %v1358 = vpack.c.b16 %v1357, %v1357
        %1359 = vrot.lane.b32.xlu0 %v1358, 96
        %v1360 = vpop.permute.xlu0 %1359
        %v1362 = vsel %vm950, %v1235, 0
        %vm1364 = vcmask 1041408
        %v1366 = vsel %vm1364, %v1360, 0
        %1368 = vmatpush.bf16.msra.mxu0 0
        %1369 = vmatpush.bf16.msra.mxu0 0
        %1370 = vmatpush.bf16.msra.mxu0 0
        %1371 = vmatpush.bf16.msra.mxu0 0
        %1372 = vmatpush.bf16.msra.mxu0 0
        %1373 = vmatpush.bf16.msra.mxu0 0
        %1374 = vmatpush.bf16.msra.mxu0 0
        %1375 = vmatpush.bf16.msra.mxu0 %v1366
        %1376 = vmatmul.bf16.gmra.mxu0 %v1362
        %v1377 = vpop.f32.mrf.mxu0
        %v1378 = vadd.f32 %v1266, %v1377
        %v1379 = vpop.f32.mrf.mxu0
        %1380 = vdwg.mxu0
        %v1382 = vunpack.c.l.b16 %v776
        %v1383 = vpack.c.b16 %v1382, %v1382
        %1384 = vrot.lane.b32.xlu0 %v1383, 96
        %v1385 = vpop.permute.xlu0 %1384
        %v1387 = vsel %vm950, %v1236, 0
        %v1390 = vsel %vm1364, %v1385, 0
        %1392 = vmatpush.bf16.msra.mxu0 0
        %1393 = vmatpush.bf16.msra.mxu0 0
        %1394 = vmatpush.bf16.msra.mxu0 0
        %1395 = vmatpush.bf16.msra.mxu0 0
        %1396 = vmatpush.bf16.msra.mxu0 0
        %1397 = vmatpush.bf16.msra.mxu0 0
        %1398 = vmatpush.bf16.msra.mxu0 0
        %1399 = vmatpush.bf16.msra.mxu0 %v1390
        %1400 = vmatmul.bf16.gmra.mxu0 %v1387
        %v1401 = vpop.f32.mrf.mxu0
        %v1402 = vadd.f32 %v1295, %v1401
        %v1403 = vpop.f32.mrf.mxu0
        %1404 = vdwg.mxu0
        %v1406 = vunpack.c.l.b16 %v777
        %v1407 = vpack.c.b16 %v1406, %v1406
        %1408 = vrot.lane.b32.xlu0 %v1407, 96
        %v1409 = vpop.permute.xlu0 %1408
        %v1411 = vsel %vm950, %v1237, 0
        %v1414 = vsel %vm1364, %v1409, 0
        %1416 = vmatpush.bf16.msra.mxu0 0
        %1417 = vmatpush.bf16.msra.mxu0 0
        %1418 = vmatpush.bf16.msra.mxu0 0
        %1419 = vmatpush.bf16.msra.mxu0 0
        %1420 = vmatpush.bf16.msra.mxu0 0
        %1421 = vmatpush.bf16.msra.mxu0 0
        %1422 = vmatpush.bf16.msra.mxu0 0
        %1423 = vmatpush.bf16.msra.mxu0 %v1414
        %1424 = vmatmul.bf16.gmra.mxu0 %v1411
        %v1425 = vpop.f32.mrf.mxu0
        %v1426 = vadd.f32 %v1324, %v1425
        %v1427 = vpop.f32.mrf.mxu0
        %1428 = vdwg.mxu0
        %v1430 = vunpack.c.l.b16 %v778
        %v1431 = vpack.c.b16 %v1430, %v1430
        %1432 = vrot.lane.b32.xlu0 %v1431, 96
        %v1433 = vpop.permute.xlu0 %1432
        %v1435 = vsel %vm950, %v1238, 0
        %v1438 = vsel %vm1364, %v1433, 0
        %1440 = vmatpush.bf16.msra.mxu0 0
        %1441 = vmatpush.bf16.msra.mxu0 0
        %1442 = vmatpush.bf16.msra.mxu0 0
        %1443 = vmatpush.bf16.msra.mxu0 0
        %1444 = vmatpush.bf16.msra.mxu0 0
        %1445 = vmatpush.bf16.msra.mxu0 0
        %1446 = vmatpush.bf16.msra.mxu0 0
        %1447 = vmatpush.bf16.msra.mxu0 %v1438
        %1448 = vmatmul.bf16.gmra.mxu0 %v1435
        %v1449 = vpop.f32.mrf.mxu0
        %v1450 = vadd.f32 %v1353, %v1449
        %v1451 = vpop.f32.mrf.mxu0
        %1452 = vdwg.mxu0
        %1453 = vst.msk [vmem:[#allocation2] sm:$0xff] %vm793, %v1378
        %1455 = vrot.lane.b32.xlu0 %v1402, 8
        %v1456 = vpop.permute.xlu0 %1455
        %vm1458 = vcmask 130112
        %1459 = vst.msk [vmem:[#allocation2] sm:$0xff] %vm1458, %v1456
        %1461 = vrot.lane.b32.xlu0 %v1426, 16
        %v1462 = vpop.permute.xlu0 %1461
        %vm1464 = vcmask 195712
        %1465 = vst.msk [vmem:[#allocation2] sm:$0xff] %vm1464, %v1462
        %1467 = vrot.lane.b32.xlu0 %v1450, 24
        %v1468 = vpop.permute.xlu0 %1467
        %vm1470 = vcmask 261312
        %1471 = vst.msk [vmem:[#allocation2] sm:$0xff] %vm1470, %v1468
        %v1472 = vld [vmem:[#allocation2] sm:$0xff]
        %v1473 = vpack.c.bf16 %v1472, %v1472
        %v1474 = vld [vmem:[%s9] sm:$0xf]
        %v1475 = vld [vmem:[%s9 + $0x4] sm:$0xf]
        %v1476 = vld [vmem:[%s9 + $0x8] sm:$0xf]
        %v1477 = vld [vmem:[%s9 + $0xc] sm:$0xf]
        %v1478 = vld [vmem:[%s10] sm:$0x1]
        %v1480 = vperm.slane %v1478, 0
        %v1486 = vunpack.c.l.b16 %v1474
        %v1487 = vunpack.c.l.b16 %v1475
        %v1488 = vunpack.c.l.b16 %v1476
        %v1489 = vunpack.c.l.b16 %v1477
        %v1490 = vpack.c.b16 %v1487, %v1486
        %v1491 = vpack.c.b16 %v1489, %v1488
        %v1495 = vsel %vm641, %v1473, 0
        %1497 = vmatpush.bf16.msra.mxu0 0
        %1498 = vmatpush.bf16.msra.mxu0 0
        %1499 = vmatpush.bf16.msra.mxu0 0
        %1500 = vmatpush.bf16.msra.mxu0 0
        %1501 = vmatpush.bf16.msra.mxu0 0
        %1502 = vmatpush.bf16.msra.mxu0 0
        %1503 = vmatpush.bf16.msra.mxu0 %v1491
        %1504 = vmatpush.bf16.msra.mxu0 %v1490
        %1505 = vmatmul.bf16.gmra.mxu0 %v1495
        %v1506 = vpop.f32.mrf.mxu0
        %v1507 = vadd.f32 %v1480, %v1506
        %v1508 = vpop.f32.mrf.mxu0
        %1509 = vdwg.mxu0
        %v1510 = vadd.f32 %v617, %v1507
        %v1511 = vld [vmem:[%s15] sm:$0x1]
        %v1512 = vld [vmem:[%s16] sm:$0x1]
        %v1513 = vsel %vm641, %v1510, 0.0
        %1514 = vadd.xlane.f32.xlu0 %v1513
        %v1515 = vpop.xlane.xlu0 %1514
        %v1516 = vrcp.pop 32.0
        %v1517 = vmul.f32 32.0, %v1516
        %v1518 = vsub.f32 1.0, %v1517
        %v1519 = vmul.f32 %v1516, %v1518
        %v1520 = vadd.f32 %v1516, %v1519
        %vm1521 = vweird.f32 %v1516
        %v1522 = vsel %vm1521, %v1516, %v1520
        %v1523 = vmul.f32 %v1515, %v1522
        %v1524 = vsub.f32 %v1510, %v1523
        %v1525 = vmul.f32 %v1524, %v1524
        %v1526 = vsel %vm641, %v1525, 0.0
        %1527 = vadd.xlane.f32.xlu0 %v1526
        %v1528 = vpop.xlane.xlu0 %1527
        %v1529 = vmul.f32 %v1528, %v1522
        %v1530 = vadd.f32 %v1529, 1e-05
        %v1531 = vrsqrt.pop %v1530
        %v1532 = vmul.f32 %v1531, %v1530
        %v1533 = vmul.f32 %v1532, %v1531
        %v1534 = vmul.f32 0.5, %v1533
        %v1535 = vsub.f32 1.5, %v1534
        %v1536 = vmul.f32 %v1531, %v1535
        %vm1537 = vweird.f32 %v1530
        %vm1538 = vweird.f32 %v1531
        %vm1539 = vmor %vm1537, %vm1538
        %v1540 = vsel %vm1539, %v1531, %v1536
        %v1541 = vmul.f32 %v1524, %v1540
        %v1543 = vperm.slane %v1511, 0
        %v1545 = vmul.f32 %v1541, %v1543
        %v1547 = vperm.slane %v1512, 0
        %v1549 = vadd.f32 %v1545, %v1547
        %v1550 = vpack.c.bf16 %v1549, %v1549
        %v1551 = vld [vmem:[%s11] sm:$0xf]
        %v1552 = vld [vmem:[%s11 + $0x4] sm:$0xf]
        %v1553 = vld [vmem:[%s11 + $0x8] sm:$0xf]
        %v1554 = vld [vmem:[%s11 + $0xc] sm:$0xf]
        %v1555 = vld [vmem:[%s12] sm:$0x1]
        %v1557 = vperm.slane %v1555, 0
        %v1563 = vunpack.c.l.b16 %v1551
        %v1564 = vunpack.c.l.b16 %v1552
        %v1565 = vunpack.c.l.b16 %v1553
        %v1566 = vunpack.c.l.b16 %v1554
        %v1567 = vpack.c.b16 %v1564, %v1563
        %v1568 = vpack.c.b16 %v1566, %v1565
        %v1572 = vsel %vm641, %v1550, 0
        %1574 = vmatpush.bf16.msra.mxu0 0
        %1575 = vmatpush.bf16.msra.mxu0 0
        %1576 = vmatpush.bf16.msra.mxu0 0
        %1577 = vmatpush.bf16.msra.mxu0 0
        %1578 = vmatpush.bf16.msra.mxu0 0
        %1579 = vmatpush.bf16.msra.mxu0 0
        %1580 = vmatpush.bf16.msra.mxu0 %v1568
        %1581 = vmatpush.bf16.msra.mxu0 %v1567
        %1582 = vmatmul.bf16.gmra.mxu0 %v1572
        %v1583 = vpop.f32.mrf.mxu0
        %v1584 = vadd.f32 %v1557, %v1583
        %v1585 = vpop.f32.mrf.mxu0
        %1586 = vdwg.mxu0
        %v1587 = vmax.f32 %v1584, 0.0
        %v1588 = vpack.c.bf16 %v1587, %v1587
        %v1589 = vld [vmem:[%s13] sm:$0xf]
        %v1590 = vld [vmem:[%s13 + $0x4] sm:$0xf]
        %v1591 = vld [vmem:[%s13 + $0x8] sm:$0xf]
        %v1592 = vld [vmem:[%s13 + $0xc] sm:$0xf]
        %v1593 = vld [vmem:[%s13 + $0x10] sm:$0xf]
        %v1594 = vld [vmem:[%s13 + $0x14] sm:$0xf]
        %v1595 = vld [vmem:[%s13 + $0x18] sm:$0xf]
        %v1596 = vld [vmem:[%s13 + $0x1c] sm:$0xf]
        %v1597 = vld [vmem:[%s14] sm:$0x1]
        %v1599 = vperm.slane %v1597, 0
        %v1609 = vunpack.c.l.b16 %v1589
        %v1610 = vunpack.c.l.b16 %v1590
        %v1611 = vunpack.c.l.b16 %v1591
        %v1612 = vunpack.c.l.b16 %v1592
        %v1613 = vunpack.c.l.b16 %v1593
        %v1614 = vunpack.c.l.b16 %v1594
        %v1615 = vunpack.c.l.b16 %v1595
        %v1616 = vunpack.c.l.b16 %v1596
        %v1617 = vpack.c.b16 %v1610, %v1609
        %v1618 = vpack.c.b16 %v1612, %v1611
        %v1619 = vpack.c.b16 %v1614, %v1613
        %v1620 = vpack.c.b16 %v1616, %v1615
        %vm1625 = vcmask 523264
        %v1627 = vsel %vm1625, %v1588, 0
        %1629 = vmatpush.bf16.msra.mxu0 0
        %1630 = vmatpush.bf16.msra.mxu0 0
        %1631 = vmatpush.bf16.msra.mxu0 0
        %1632 = vmatpush.bf16.msra.mxu0 0
        %1633 = vmatpush.bf16.msra.mxu0 %v1620
        %1634 = vmatpush.bf16.msra.mxu0 %v1619
        %1635 = vmatpush.bf16.msra.mxu0 %v1618
        %1636 = vmatpush.bf16.msra.mxu0 %v1617
        %1637 = vmatmul.bf16.gmra.mxu0 %v1627
        %v1638 = vpop.f32.mrf.mxu0
        %v1639 = vadd.f32 %v1599, %v1638
        %v1640 = vpop.f32.mrf.mxu0
        %1641 = vdwg.mxu0
        %v1642 = vadd.f32 %v1549, %v1639
        %s1643 = scalar_lea.vmem %s15, 1
        %v1644 = vld [vmem:[%s1643] sm:$0x1]
        %s1645 = scalar_lea.vmem %s16, 1
        %v1646 = vld [vmem:[%s1645] sm:$0x1]
        %v1647 = vsel %vm641, %v1642, 0.0
        %1648 = vadd.xlane.f32.xlu0 %v1647
        %v1649 = vpop.xlane.xlu0 %1648
        %v1650 = vmul.f32 %v1649, %v1522
        %v1651 = vsub.f32 %v1642, %v1650
        %v1652 = vmul.f32 %v1651, %v1651
        %v1653 = vsel %vm641, %v1652, 0.0
        %1654 = vadd.xlane.f32.xlu0 %v1653
        %v1655 = vpop.xlane.xlu0 %1654
        %v1656 = vmul.f32 %v1655, %v1522
        %v1657 = vadd.f32 %v1656, 1e-05
        %v1658 = vrsqrt.pop %v1657
        %v1659 = vmul.f32 %v1658, %v1657
        %v1660 = vmul.f32 %v1659, %v1658
        %v1661 = vmul.f32 0.5, %v1660
        %v1662 = vsub.f32 1.5, %v1661
        %v1663 = vmul.f32 %v1658, %v1662
        %vm1664 = vweird.f32 %v1657
        %vm1665 = vweird.f32 %v1658
        %vm1666 = vmor %vm1664, %vm1665
        %v1667 = vsel %vm1666, %v1658, %v1663
        %v1668 = vmul.f32 %v1651, %v1667
        %v1670 = vperm.slane %v1644, 0
        %v1672 = vmul.f32 %v1668, %v1670
        %v1674 = vperm.slane %v1646, 0
        %v1676 = vadd.f32 %v1672, %v1674
        %1677 = vst.msk [vmem:[%s611] sm:$0xff] %vm641, %v1676
        %s1678 = sand.u32 %s410, 1
        %s1679 = scalar_lea.sflag [#allocation5], %s1678
        %s1680 = sand.u32 %s410, 1
        %s1681 = smul.addr %s1680, 8
        %s1682 = scalar_lea.vmem [#allocation9], %s1681
        // Predicated region
        $region101: #{tpu_custom_call.1} parent=87 // pred_check
          %p1683 = pneg %p420
        $region102: #{tpu_custom_call.1} parent=87 // pred_check_branch
          %1685 = sbr.rel (%p1683) target = $region104
        $region103: #{tpu_custom_call.1} parent=87 // pred_region
          %1687 = vsyncadd %s1679, 0
          %s1688 = smul.addr %s35, 8
          %s1689 = scalar_lea.hbm %s17, %s1688
          %s1691 = sshll.u32 %s1682, 4
          %s1692 = int_to_ptr.vmem [resolvable:$true] %s1691
          %s1693 = sshll.u32 %s1689, 4
          %s1694 = int_to_ptr.hbm [resolvable:$true] %s1693
          %1696 = dma.vmem_to_hbm [thread:$0]  %s1692, 128, %s1694, %s1679
        $region104: #{tpu_custom_call.1} parent=87 // pred_fallthru
          _
      $region88: #{tpu_custom_call.1} parent=5 // pred_fallthru
        _
      %p1697 = scmp.le.s32.totalorder 2, %s30
      // Predicated region
      $region105: #{tpu_custom_call.1} parent=5 // pred_check
        %p1698 = pneg %p1697
      $region106: #{tpu_custom_call.1} parent=5 // pred_check_branch
        %1700 = sbr.rel (%p1698) target = $region108
      $region107: #{tpu_custom_call.1} parent=5 // pred_region
        %s1701 = ssub.s32 %s30, 2
        // Predicated region
        $region109: #{tpu_custom_call.1} parent=107 // pred_check
          %p1702 = pneg %p426
        $region110: #{tpu_custom_call.1} parent=107 // pred_check_branch
          %1704 = sbr.rel (%p1702) target = $region112
        $region111: #{tpu_custom_call.1} parent=107 // pred_region
          %s1705 = sand.u32 %s411, 1
          %s1706 = scalar_lea.sflag [#allocation5], %s1705
          %s1707 = sand.u32 %s411, 1
          %s1708 = smul.addr %s1707, 8
          %s1709 = scalar_lea.vmem [#allocation9], %s1708
          %1711 = dma.done %s1706, 128
        $region112: #{tpu_custom_call.1} parent=107 // pred_fallthru
          _
      $region108: #{tpu_custom_call.1} parent=5 // pred_fallthru
        _
    $region6: #{tpu_custom_call.1} parent=1 // loop_footer
      %s34 = sadd.s32 1, %s30
    $region7: #{tpu_custom_call.1} parent=1 // loop_footer_branch
      %29 = sbr.rel target = $region3
    $region8: #{tpu_custom_call.1} parent=1 // loop_exit
      _
    %1712 = vsyncpa [#allocation4], 1
    %s1713 = scalar_lea.sflag [#allocation4], 1
    %1714 = vsyncpa %s1713, 1
    %1715 = vsyncpa [#allocation7], 1
    %1716 = vsyncpa [#allocation5], 1
    %s1717 = scalar_lea.sflag [#allocation5], 1
    %1718 = vsyncpa %s1717, 1

</llo_original>
